<compile_context>
chip_gen: v7x
topology: tpu7x:2x2x1
jax: 0.10.0
libtpu: 0.0.40
codegen_flags: <defaults>
</compile_context>

<pallas_src>
import functools
from typing import NamedTuple

import jax
import jax.numpy as jnp
from jax.experimental import pallas as pl
from jax.experimental.pallas import tpu as pltpu

_LANE = 128      # vreg lane width
_SUBLANE = 8     # vreg sublane count


def _round_up(x, m):
    return (x + m - 1) // m * m


class PackedParams(NamedTuple):
    w_ih: jax.Array   # (D, 4*Hp)  bf16, gate order [i, f, o, g]
    w_hh: jax.Array   # (Hp, 4*Hp) bf16, gate order [i, f, o, g]
    b: jax.Array      # (1, 4*Hp)  f32, b_ih + b_hh, gate order [i, f, o, g]
    w_lin: jax.Array  # (Hp, Op)   bf16
    b_lin: jax.Array  # (1, Op)    f32


# PyTorch nn.LSTM gate order is [i, f, g, o]; the kernel wants [i, f, o, g] so
# the three sigmoid gates form one contiguous 3*Hp block.
_GATE_SRC = (0, 1, 3, 2)


def pack_params(params):
    """One-time PyTorch-layout -> TPU-layout packing.

    Call ONCE (outside the jitted forward) and reuse the result. Each gate g is
    moved to column offset dst*Hp so every gate slice in the kernel is a full
    128-lane block; padded rows/cols are zero so padded h/c lanes stay zero.
    Weights are stored bf16 (MXU-native), biases stay f32.
    """
    w_ih = jnp.asarray(params["w_ih"], jnp.float32)      # (4H, D)
    w_hh = jnp.asarray(params["w_hh"], jnp.float32)      # (4H, H)
    b = jnp.asarray(params["b_ih"], jnp.float32) + jnp.asarray(params["b_hh"], jnp.float32)
    w_lin = jnp.asarray(params["w_lin"], jnp.float32)    # (O, H)
    b_lin = jnp.asarray(params["b_lin"], jnp.float32)    # (O,)

    D = w_ih.shape[1]
    H = w_hh.shape[1]
    O = w_lin.shape[0]
    Hp = _round_up(max(H, 1), _LANE)
    Op = _round_up(max(O, 1), _LANE)

    wih_p = jnp.zeros((D, 4 * Hp), jnp.float32)
    whh_p = jnp.zeros((Hp, 4 * Hp), jnp.float32)
    b_p = jnp.zeros((1, 4 * Hp), jnp.float32)
    for dst, src in enumerate(_GATE_SRC):
        wih_p = wih_p.at[:, dst * Hp:dst * Hp + H].set(w_ih[src * H:(src + 1) * H, :].T)
        whh_p = whh_p.at[:H, dst * Hp:dst * Hp + H].set(w_hh[src * H:(src + 1) * H, :].T)
        b_p = b_p.at[0, dst * Hp:dst * Hp + H].set(b[src * H:(src + 1) * H])

    wlin_p = jnp.zeros((Hp, Op), jnp.float32).at[:H, :O].set(w_lin.T)
    blin_p = jnp.zeros((1, Op), jnp.float32).at[0, :O].set(b_lin)

    packed = PackedParams(
        w_ih=wih_p.astype(jnp.bfloat16),
        w_hh=whh_p.astype(jnp.bfloat16),
        b=b_p,
        w_lin=wlin_p.astype(jnp.bfloat16),
        b_lin=blin_p,
    )
    return packed, (D, H, O)


def _lstm_kernel(x_ref, wih_ref, whh_ref, b_ref, wlin_ref, blin_ref,
                 out_ref, hn_ref, cn_ref, xw_ref,
                 *, seq_len, batch_p, hidden_p, classification_mode):
    """Whole-sequence LSTM + Linear head.

    x_ref    : (T*Bp, D)   bf16  all time steps, batch padded to sublanes
    wih_ref  : (D, 4*Hp)   bf16  gate-remapped W_ih^T
    whh_ref  : (Hp, 4*Hp)  bf16  gate-remapped, zero-padded W_hh^T
    b_ref    : (1, 4*Hp)   f32   b_ih + b_hh
    wlin_ref : (Hp, Op)    bf16  zero-padded W_lin^T
    blin_ref : (1, Op)     f32
    outputs  : out (Bp, Op), h_n (Bp, Hp), c_n (Bp, Hp)   all f32
    xw_ref   : (T*Bp, 4*Hp) f32 scratch holding the hoisted input projection
    """
    Bp = batch_p
    Hp = hidden_p

    # One MXU matmul for the input projection of every time step (bf16 ops,
    # f32 accumulate), bias added once.  Written to VMEM scratch so it is NOT
    # held in vregs across the unrolled recurrence (no spills).
    xw_ref[...] = jnp.dot(x_ref[...], wih_ref[...],
                          preferred_element_type=jnp.float32) + b_ref[...]

    h = jnp.zeros((Bp, Hp), jnp.float32)
    c = jnp.zeros((Bp, Hp), jnp.float32)

    # seq_len is small and static: full unroll keeps every slice static and
    # 128-lane / 8-sublane aligned.  whh_ref is re-read each step (remat-able
    # load) instead of being a loop-carried 64-vreg SSA value.
    for t in range(seq_len):
        gates = xw_ref[pl.ds(t * Bp, Bp), :] + jnp.dot(
            h.astype(jnp.bfloat16), whh_ref[...],
            preferred_element_type=jnp.float32)                      # (Bp, 4Hp)
        # Gate order [i, f, o, g]: single sigmoid over the leading 3*Hp block.
        sig = jax.nn.sigmoid(gates[:, 0:3 * Hp])
        i_g = sig[:, 0 * Hp:1 * Hp]
        f_g = sig[:, 1 * Hp:2 * Hp]
        o_g = sig[:, 2 * Hp:3 * Hp]
        g_g = jnp.tanh(gates[:, 3 * Hp:4 * Hp])
        c = f_g * c + i_g * g_g
        h = o_g * jnp.tanh(c)

    hn_ref[...] = h
    cn_ref[...] = c

    lin = jnp.dot(h.astype(jnp.bfloat16), wlin_ref[...],
                  preferred_element_type=jnp.float32) + blin_ref[...]  # (Bp, Op)
    if classification_mode:
        lin = jax.nn.sigmoid(lin)
    out_ref[...] = lin


@functools.partial(jax.jit, static_argnames=("dims", "classification_mode"))
def lstm_model_forward(x, packed, dims, classification_mode=False):
    """x: (B, T, D) float32, batch_first.  packed, dims = pack_params(params)."""
    B, T, D = x.shape
    _, H, O = dims
    Hp = packed.w_hh.shape[0]
    Op = packed.w_lin.shape[1]
    Bp = _round_up(max(B, 1), _SUBLANE)

    # (B, T, D) -> (T, Bp, D) -> (T*Bp, D) bf16.  D is NOT lane-padded in HBM:
    # a full-array VMEM block has no 128-lane requirement (Mosaic pads
    # internally), so the relayout is a single fused transpose + pad.
    x_t = jnp.transpose(x.astype(jnp.float32), (1, 0, 2))
    x_flat = jnp.pad(x_t, ((0, 0), (0, Bp - B), (0, 0))).reshape(T * Bp, D)
    x_flat = x_flat.astype(jnp.bfloat16)

    kernel = functools.partial(
        _lstm_kernel,
        seq_len=T, batch_p=Bp, hidden_p=Hp,
        classification_mode=classification_mode)

    out_p, hn_p, cn_p = pl.pallas_call(
        kernel,
        out_shape=(
            jax.ShapeDtypeStruct((Bp, Op), jnp.float32),
            jax.ShapeDtypeStruct((Bp, Hp), jnp.float32),
            jax.ShapeDtypeStruct((Bp, Hp), jnp.float32),
        ),
        in_specs=[pl.BlockSpec(memory_space=pltpu.MemorySpace.VMEM)] * 6,
        out_specs=(
            pl.BlockSpec(memory_space=pltpu.MemorySpace.VMEM),
            pl.BlockSpec(memory_space=pltpu.MemorySpace.VMEM),
            pl.BlockSpec(memory_space=pltpu.MemorySpace.VMEM),
        ),
        scratch_shapes=[pltpu.VMEM((T * Bp, 4 * Hp), jnp.float32)],
    )(x_flat, packed.w_ih, packed.w_hh, packed.b, packed.w_lin, packed.b_lin)

    # Slice the padding away in the wrapper (free layout plumbing).
    out = out_p[:B, :O]
    h_n = hn_p[:B, :H][None, :, :]
    c_n = cn_p[:B, :H][None, :, :]
    return out, (h_n, c_n)


def init_params(key, input_size=5, hidden_size=50, output_size=1):
    """Deterministic synthetic parameters with exact nn.LSTM / nn.Linear shapes."""
    k = jax.random.split(key, 6)
    s = 1.0 / jnp.sqrt(hidden_size)
    return {
        "w_ih": jax.random.uniform(k[0], (4 * hidden_size, input_size), jnp.float32, -s, s),
        "w_hh": jax.random.uniform(k[1], (4 * hidden_size, hidden_size), jnp.float32, -s, s),
        "b_ih": jax.random.uniform(k[2], (4 * hidden_size,), jnp.float32, -s, s),
        "b_hh": jax.random.uniform(k[3], (4 * hidden_size,), jnp.float32, -s, s),
        "w_lin": jax.random.uniform(k[4], (output_size, hidden_size), jnp.float32, -s, s),
        "b_lin": jax.random.uniform(k[5], (output_size,), jnp.float32, -s, s),
    }


def _reference_forward(x, params, classification_mode=False):
    """Pure-JAX f32 reference of the same forward pass (PyTorch gate order)."""
    B, T, _ = x.shape
    H = params["w_hh"].shape[1]
    w_ih_t = params["w_ih"].T
    w_hh_t = params["w_hh"].T
    b = params["b_ih"] + params["b_hh"]
    h = jnp.zeros((B, H), jnp.float32)
    c = jnp.zeros((B, H), jnp.float32)
    for t in range(T):
        gates = x[:, t, :] @ w_ih_t + h @ w_hh_t + b
        i = jax.nn.sigmoid(gates[:, 0 * H:1 * H])
        f = jax.nn.sigmoid(gates[:, 1 * H:2 * H])
        g = jnp.tanh(gates[:, 2 * H:3 * H])
        o = jax.nn.sigmoid(gates[:, 3 * H:4 * H])
        c = f * c + i * g
        h = o * jnp.tanh(c)
    out = h @ params["w_lin"].T + params["b_lin"]
    if classification_mode:
        out = jax.nn.sigmoid(out)
    return out, (h[None], c[None])


if __name__ == "__main__":
    key = jax.random.PRNGKey(0)
    k_x, k_p = jax.random.split(key)

    B, T, D, H, O = 2, 8, 5, 50, 1
    x = jax.random.normal(k_x, (B, T, D), jnp.float32)
    params = init_params(k_p, input_size=D, hidden_size=H, output_size=O)

    # Pack weights ONCE outside the per-call jitted path and reuse.
    packed, dims = pack_params(params)
    jax.block_until_ready(packed)

    out, (h_n, c_n) = lstm_model_forward(x, packed, dims, classification_mode=False)
    jax.block_until_ready((out, h_n, c_n))

    # Correctness check against the pure-JAX f32 reference.  bf16 MXU operands
    # (with f32 accumulation) -> slightly looser tolerance than pure f32.
    ref_out, (ref_h, ref_c) = _reference_forward(x, params)
    assert out.shape == (B, O) and h_n.shape == (1, B, H) and c_n.shape == (1, B, H)
    assert jnp.allclose(out, ref_out, atol=2e-2), "out mismatch"
    assert jnp.allclose(h_n, ref_h, atol=2e-2), "h_n mismatch"
    assert jnp.allclose(c_n, ref_c, atol=2e-2), "c_n mismatch"

    # Also exercise the classification head once.
    out_c, _ = lstm_model_forward(x, packed, dims, classification_mode=True)
    jax.block_until_ready(out_c)
    ref_out_c, _ = _reference_forward(x, params, classification_mode=True)
    assert jnp.allclose(out_c, ref_out_c, atol=2e-2), "classification out mismatch"

    print("KERNEL_OK")
</pallas_src>

<mosaic_0001>
module attributes {stable_mosaic.version = 11 : i64} {
  func.func @_lstm_kernel(%arg0: memref<64x5xbf16, #tpu.memory_space<vmem>>, %arg1: memref<5x512xbf16, #tpu.memory_space<vmem>>, %arg2: memref<128x512xbf16, #tpu.memory_space<vmem>>, %arg3: memref<1x512xf32, #tpu.memory_space<vmem>>, %arg4: memref<128x128xbf16, #tpu.memory_space<vmem>>, %arg5: memref<1x128xf32, #tpu.memory_space<vmem>>, %arg6: memref<8x128xf32, #tpu.memory_space<vmem>>, %arg7: memref<8x128xf32, #tpu.memory_space<vmem>>, %arg8: memref<8x128xf32, #tpu.memory_space<vmem>>, %arg9: memref<64x512xf32, #tpu.memory_space<vmem>>) attributes {dimension_semantics = [], scalar_prefetch = 0 : i64, scratch_operands = 1 : i64, tpu.core_type = #tpu.core_type<tc>} {
    %c0 = arith.constant 0 : index
    %c0_0 = arith.constant 0 : index
    %0 = vector.load %arg0[%c0, %c0_0] : memref<64x5xbf16, #tpu.memory_space<vmem>>, vector<64x5xbf16>
    %c0_1 = arith.constant 0 : index
    %c0_2 = arith.constant 0 : index
    %1 = vector.load %arg1[%c0_1, %c0_2] : memref<5x512xbf16, #tpu.memory_space<vmem>>, vector<5x512xbf16>
    %cst = arith.constant dense<0.000000e+00> : vector<64x512xf32>
    %2 = tpu.matmul %0, %1, %cst {dimension_numbers = #tpu.dot_dimension_numbers<[1], [0], [0], [1], [0, 0, 1, 1], [], []>} : vector<64x5xbf16>, vector<5x512xbf16>, vector<64x512xf32> -> vector<64x512xf32>
    %c0_3 = arith.constant 0 : index
    %c0_4 = arith.constant 0 : index
    %3 = vector.load %arg3[%c0_3, %c0_4] : memref<1x512xf32, #tpu.memory_space<vmem>>, vector<1x512xf32>
    %4 = vector.broadcast %3 : vector<1x512xf32> to vector<64x512xf32>
    %5 = arith.addf %2, %4 : vector<64x512xf32>
    %c0_5 = arith.constant 0 : index
    %c0_6 = arith.constant 0 : index
    %6 = vector.load %arg9[%c0_5, %c0_6] : memref<64x512xf32, #tpu.memory_space<vmem>>, vector<64x512xf32>
    tpu.vector_store %arg9[%c0_5, %c0_6], %5 {strides = array<i32>} : memref<64x512xf32, #tpu.memory_space<vmem>>, vector<64x512xf32>,
    %cst_7 = arith.constant 0.000000e+00 : f32
    %7 = vector.broadcast %cst_7 : f32 to vector<8x128xf32>
    %cst_8 = arith.constant 0.000000e+00 : f32
    %8 = vector.broadcast %cst_8 : f32 to vector<8x128xf32>
    %c0_9 = arith.constant 0 : index
    %c0_10 = arith.constant 0 : index
    %9 = vector.load %arg9[%c0_9, %c0_10] : memref<64x512xf32, #tpu.memory_space<vmem>>, vector<8x512xf32>
    %10 = arith.truncf %7 : vector<8x128xf32> to vector<8x128xbf16>
    %c0_11 = arith.constant 0 : index
    %c0_12 = arith.constant 0 : index
    %11 = vector.load %arg2[%c0_11, %c0_12] : memref<128x512xbf16, #tpu.memory_space<vmem>>, vector<128x512xbf16>
    %cst_13 = arith.constant dense<0.000000e+00> : vector<8x512xf32>
    %12 = tpu.matmul %10, %11, %cst_13 {dimension_numbers = #tpu.dot_dimension_numbers<[1], [0], [0], [1], [0, 0, 1, 1], [], []>} : vector<8x128xbf16>, vector<128x512xbf16>, vector<8x512xf32> -> vector<8x512xf32>
    %13 = arith.addf %9, %12 : vector<8x512xf32>
    %14 = vector.extract_strided_slice %13 {offsets = [0, 0], sizes = [8, 384], strides = [1, 1]} : vector<8x512xf32> to vector<8x384xf32>
    %15 = arith.negf %14 : vector<8x384xf32>
    %16 = math.exp %15 : vector<8x384xf32>
    %cst_14 = arith.constant 1.000000e+00 : f32
    %17 = vector.broadcast %cst_14 : f32 to vector<8x384xf32>
    %18 = arith.addf %17, %16 : vector<8x384xf32>
    %19 = arith.divf %17, %18 : vector<8x384xf32>
    %20 = vector.extract_strided_slice %19 {offsets = [0, 0], sizes = [8, 128], strides = [1, 1]} : vector<8x384xf32> to vector<8x128xf32>
    %21 = vector.extract_strided_slice %19 {offsets = [0, 128], sizes = [8, 128], strides = [1, 1]} : vector<8x384xf32> to vector<8x128xf32>
    %22 = vector.extract_strided_slice %19 {offsets = [0, 256], sizes = [8, 128], strides = [1, 1]} : vector<8x384xf32> to vector<8x128xf32>
    %23 = vector.extract_strided_slice %13 {offsets = [0, 384], sizes = [8, 128], strides = [1, 1]} : vector<8x512xf32> to vector<8x128xf32>
    %24 = math.tanh %23 : vector<8x128xf32>
    %25 = arith.mulf %21, %8 : vector<8x128xf32>
    %26 = arith.mulf %20, %24 : vector<8x128xf32>
    %27 = arith.addf %25, %26 : vector<8x128xf32>
    %28 = math.tanh %27 : vector<8x128xf32>
    %29 = arith.mulf %22, %28 : vector<8x128xf32>
    %c8 = arith.constant 8 : index
    %c0_15 = arith.constant 0 : index
    %30 = vector.load %arg9[%c8, %c0_15] : memref<64x512xf32, #tpu.memory_space<vmem>>, vector<8x512xf32>
    %31 = arith.truncf %29 : vector<8x128xf32> to vector<8x128xbf16>
    %c0_16 = arith.constant 0 : index
    %c0_17 = arith.constant 0 : index
    %32 = vector.load %arg2[%c0_16, %c0_17] : memref<128x512xbf16, #tpu.memory_space<vmem>>, vector<128x512xbf16>
    %cst_18 = arith.constant dense<0.000000e+00> : vector<8x512xf32>
    %33 = tpu.matmul %31, %32, %cst_18 {dimension_numbers = #tpu.dot_dimension_numbers<[1], [0], [0], [1], [0, 0, 1, 1], [], []>} : vector<8x128xbf16>, vector<128x512xbf16>, vector<8x512xf32> -> vector<8x512xf32>
    %34 = arith.addf %30, %33 : vector<8x512xf32>
    %35 = vector.extract_strided_slice %34 {offsets = [0, 0], sizes = [8, 384], strides = [1, 1]} : vector<8x512xf32> to vector<8x384xf32>
    %36 = arith.negf %35 : vector<8x384xf32>
    %37 = math.exp %36 : vector<8x384xf32>
    %cst_19 = arith.constant 1.000000e+00 : f32
    %38 = vector.broadcast %cst_19 : f32 to vector<8x384xf32>
    %39 = arith.addf %38, %37 : vector<8x384xf32>
    %40 = arith.divf %38, %39 : vector<8x384xf32>
    %41 = vector.extract_strided_slice %40 {offsets = [0, 0], sizes = [8, 128], strides = [1, 1]} : vector<8x384xf32> to vector<8x128xf32>
    %42 = vector.extract_strided_slice %40 {offsets = [0, 128], sizes = [8, 128], strides = [1, 1]} : vector<8x384xf32> to vector<8x128xf32>
    %43 = vector.extract_strided_slice %40 {offsets = [0, 256], sizes = [8, 128], strides = [1, 1]} : vector<8x384xf32> to vector<8x128xf32>
    %44 = vector.extract_strided_slice %34 {offsets = [0, 384], sizes = [8, 128], strides = [1, 1]} : vector<8x512xf32> to vector<8x128xf32>
    %45 = math.tanh %44 : vector<8x128xf32>
    %46 = arith.mulf %42, %27 : vector<8x128xf32>
    %47 = arith.mulf %41, %45 : vector<8x128xf32>
    %48 = arith.addf %46, %47 : vector<8x128xf32>
    %49 = math.tanh %48 : vector<8x128xf32>
    %50 = arith.mulf %43, %49 : vector<8x128xf32>
    %c16 = arith.constant 16 : index
    %c0_20 = arith.constant 0 : index
    %51 = vector.load %arg9[%c16, %c0_20] : memref<64x512xf32, #tpu.memory_space<vmem>>, vector<8x512xf32>
    %52 = arith.truncf %50 : vector<8x128xf32> to vector<8x128xbf16>
    %c0_21 = arith.constant 0 : index
    %c0_22 = arith.constant 0 : index
    %53 = vector.load %arg2[%c0_21, %c0_22] : memref<128x512xbf16, #tpu.memory_space<vmem>>, vector<128x512xbf16>
    %cst_23 = arith.constant dense<0.000000e+00> : vector<8x512xf32>
    %54 = tpu.matmul %52, %53, %cst_23 {dimension_numbers = #tpu.dot_dimension_numbers<[1], [0], [0], [1], [0, 0, 1, 1], [], []>} : vector<8x128xbf16>, vector<128x512xbf16>, vector<8x512xf32> -> vector<8x512xf32>
    %55 = arith.addf %51, %54 : vector<8x512xf32>
    %56 = vector.extract_strided_slice %55 {offsets = [0, 0], sizes = [8, 384], strides = [1, 1]} : vector<8x512xf32> to vector<8x384xf32>
    %57 = arith.negf %56 : vector<8x384xf32>
    %58 = math.exp %57 : vector<8x384xf32>
    %cst_24 = arith.constant 1.000000e+00 : f32
    %59 = vector.broadcast %cst_24 : f32 to vector<8x384xf32>
    %60 = arith.addf %59, %58 : vector<8x384xf32>
    %61 = arith.divf %59, %60 : vector<8x384xf32>
    %62 = vector.extract_strided_slice %61 {offsets = [0, 0], sizes = [8, 128], strides = [1, 1]} : vector<8x384xf32> to vector<8x128xf32>
    %63 = vector.extract_strided_slice %61 {offsets = [0, 128], sizes = [8, 128], strides = [1, 1]} : vector<8x384xf32> to vector<8x128xf32>
    %64 = vector.extract_strided_slice %61 {offsets = [0, 256], sizes = [8, 128], strides = [1, 1]} : vector<8x384xf32> to vector<8x128xf32>
    %65 = vector.extract_strided_slice %55 {offsets = [0, 384], sizes = [8, 128], strides = [1, 1]} : vector<8x512xf32> to vector<8x128xf32>
    %66 = math.tanh %65 : vector<8x128xf32>
    %67 = arith.mulf %63, %48 : vector<8x128xf32>
    %68 = arith.mulf %62, %66 : vector<8x128xf32>
    %69 = arith.addf %67, %68 : vector<8x128xf32>
    %70 = math.tanh %69 : vector<8x128xf32>
    %71 = arith.mulf %64, %70 : vector<8x128xf32>
    %c24 = arith.constant 24 : index
    %c0_25 = arith.constant 0 : index
    %72 = vector.load %arg9[%c24, %c0_25] : memref<64x512xf32, #tpu.memory_space<vmem>>, vector<8x512xf32>
    %73 = arith.truncf %71 : vector<8x128xf32> to vector<8x128xbf16>
    %c0_26 = arith.constant 0 : index
    %c0_27 = arith.constant 0 : index
    %74 = vector.load %arg2[%c0_26, %c0_27] : memref<128x512xbf16, #tpu.memory_space<vmem>>, vector<128x512xbf16>
    %cst_28 = arith.constant dense<0.000000e+00> : vector<8x512xf32>
    %75 = tpu.matmul %73, %74, %cst_28 {dimension_numbers = #tpu.dot_dimension_numbers<[1], [0], [0], [1], [0, 0, 1, 1], [], []>} : vector<8x128xbf16>, vector<128x512xbf16>, vector<8x512xf32> -> vector<8x512xf32>
    %76 = arith.addf %72, %75 : vector<8x512xf32>
    %77 = vector.extract_strided_slice %76 {offsets = [0, 0], sizes = [8, 384], strides = [1, 1]} : vector<8x512xf32> to vector<8x384xf32>
    %78 = arith.negf %77 : vector<8x384xf32>
    %79 = math.exp %78 : vector<8x384xf32>
    %cst_29 = arith.constant 1.000000e+00 : f32
    %80 = vector.broadcast %cst_29 : f32 to vector<8x384xf32>
    %81 = arith.addf %80, %79 : vector<8x384xf32>
    %82 = arith.divf %80, %81 : vector<8x384xf32>
    %83 = vector.extract_strided_slice %82 {offsets = [0, 0], sizes = [8, 128], strides = [1, 1]} : vector<8x384xf32> to vector<8x128xf32>
    %84 = vector.extract_strided_slice %82 {offsets = [0, 128], sizes = [8, 128], strides = [1, 1]} : vector<8x384xf32> to vector<8x128xf32>
    %85 = vector.extract_strided_slice %82 {offsets = [0, 256], sizes = [8, 128], strides = [1, 1]} : vector<8x384xf32> to vector<8x128xf32>
    %86 = vector.extract_strided_slice %76 {offsets = [0, 384], sizes = [8, 128], strides = [1, 1]} : vector<8x512xf32> to vector<8x128xf32>
    %87 = math.tanh %86 : vector<8x128xf32>
    %88 = arith.mulf %84, %69 : vector<8x128xf32>
    %89 = arith.mulf %83, %87 : vector<8x128xf32>
    %90 = arith.addf %88, %89 : vector<8x128xf32>
    %91 = math.tanh %90 : vector<8x128xf32>
    %92 = arith.mulf %85, %91 : vector<8x128xf32>
    %c32 = arith.constant 32 : index
    %c0_30 = arith.constant 0 : index
    %93 = vector.load %arg9[%c32, %c0_30] : memref<64x512xf32, #tpu.memory_space<vmem>>, vector<8x512xf32>
    %94 = arith.truncf %92 : vector<8x128xf32> to vector<8x128xbf16>
    %c0_31 = arith.constant 0 : index
    %c0_32 = arith.constant 0 : index
    %95 = vector.load %arg2[%c0_31, %c0_32] : memref<128x512xbf16, #tpu.memory_space<vmem>>, vector<128x512xbf16>
    %cst_33 = arith.constant dense<0.000000e+00> : vector<8x512xf32>
    %96 = tpu.matmul %94, %95, %cst_33 {dimension_numbers = #tpu.dot_dimension_numbers<[1], [0], [0], [1], [0, 0, 1, 1], [], []>} : vector<8x128xbf16>, vector<128x512xbf16>, vector<8x512xf32> -> vector<8x512xf32>
    %97 = arith.addf %93, %96 : vector<8x512xf32>
    %98 = vector.extract_strided_slice %97 {offsets = [0, 0], sizes = [8, 384], strides = [1, 1]} : vector<8x512xf32> to vector<8x384xf32>
    %99 = arith.negf %98 : vector<8x384xf32>
    %100 = math.exp %99 : vector<8x384xf32>
    %cst_34 = arith.constant 1.000000e+00 : f32
    %101 = vector.broadcast %cst_34 : f32 to vector<8x384xf32>
    %102 = arith.addf %101, %100 : vector<8x384xf32>
    %103 = arith.divf %101, %102 : vector<8x384xf32>
    %104 = vector.extract_strided_slice %103 {offsets = [0, 0], sizes = [8, 128], strides = [1, 1]} : vector<8x384xf32> to vector<8x128xf32>
    %105 = vector.extract_strided_slice %103 {offsets = [0, 128], sizes = [8, 128], strides = [1, 1]} : vector<8x384xf32> to vector<8x128xf32>
    %106 = vector.extract_strided_slice %103 {offsets = [0, 256], sizes = [8, 128], strides = [1, 1]} : vector<8x384xf32> to vector<8x128xf32>
    %107 = vector.extract_strided_slice %97 {offsets = [0, 384], sizes = [8, 128], strides = [1, 1]} : vector<8x512xf32> to vector<8x128xf32>
    %108 = math.tanh %107 : vector<8x128xf32>
    %109 = arith.mulf %105, %90 : vector<8x128xf32>
    %110 = arith.mulf %104, %108 : vector<8x128xf32>
    %111 = arith.addf %109, %110 : vector<8x128xf32>
    %112 = math.tanh %111 : vector<8x128xf32>
    %113 = arith.mulf %106, %112 : vector<8x128xf32>
    %c40 = arith.constant 40 : index
    %c0_35 = arith.constant 0 : index
    %114 = vector.load %arg9[%c40, %c0_35] : memref<64x512xf32, #tpu.memory_space<vmem>>, vector<8x512xf32>
    %115 = arith.truncf %113 : vector<8x128xf32> to vector<8x128xbf16>
    %c0_36 = arith.constant 0 : index
    %c0_37 = arith.constant 0 : index
    %116 = vector.load %arg2[%c0_36, %c0_37] : memref<128x512xbf16, #tpu.memory_space<vmem>>, vector<128x512xbf16>
    %cst_38 = arith.constant dense<0.000000e+00> : vector<8x512xf32>
    %117 = tpu.matmul %115, %116, %cst_38 {dimension_numbers = #tpu.dot_dimension_numbers<[1], [0], [0], [1], [0, 0, 1, 1], [], []>} : vector<8x128xbf16>, vector<128x512xbf16>, vector<8x512xf32> -> vector<8x512xf32>
    %118 = arith.addf %114, %117 : vector<8x512xf32>
    %119 = vector.extract_strided_slice %118 {offsets = [0, 0], sizes = [8, 384], strides = [1, 1]} : vector<8x512xf32> to vector<8x384xf32>
    %120 = arith.negf %119 : vector<8x384xf32>
    %121 = math.exp %120 : vector<8x384xf32>
    %cst_39 = arith.constant 1.000000e+00 : f32
    %122 = vector.broadcast %cst_39 : f32 to vector<8x384xf32>
    %123 = arith.addf %122, %121 : vector<8x384xf32>
    %124 = arith.divf %122, %123 : vector<8x384xf32>
    %125 = vector.extract_strided_slice %124 {offsets = [0, 0], sizes = [8, 128], strides = [1, 1]} : vector<8x384xf32> to vector<8x128xf32>
    %126 = vector.extract_strided_slice %124 {offsets = [0, 128], sizes = [8, 128], strides = [1, 1]} : vector<8x384xf32> to vector<8x128xf32>
    %127 = vector.extract_strided_slice %124 {offsets = [0, 256], sizes = [8, 128], strides = [1, 1]} : vector<8x384xf32> to vector<8x128xf32>
    %128 = vector.extract_strided_slice %118 {offsets = [0, 384], sizes = [8, 128], strides = [1, 1]} : vector<8x512xf32> to vector<8x128xf32>
    %129 = math.tanh %128 : vector<8x128xf32>
    %130 = arith.mulf %126, %111 : vector<8x128xf32>
    %131 = arith.mulf %125, %129 : vector<8x128xf32>
    %132 = arith.addf %130, %131 : vector<8x128xf32>
    %133 = math.tanh %132 : vector<8x128xf32>
    %134 = arith.mulf %127, %133 : vector<8x128xf32>
    %c48 = arith.constant 48 : index
    %c0_40 = arith.constant 0 : index
    %135 = vector.load %arg9[%c48, %c0_40] : memref<64x512xf32, #tpu.memory_space<vmem>>, vector<8x512xf32>
    %136 = arith.truncf %134 : vector<8x128xf32> to vector<8x128xbf16>
    %c0_41 = arith.constant 0 : index
    %c0_42 = arith.constant 0 : index
    %137 = vector.load %arg2[%c0_41, %c0_42] : memref<128x512xbf16, #tpu.memory_space<vmem>>, vector<128x512xbf16>
    %cst_43 = arith.constant dense<0.000000e+00> : vector<8x512xf32>
    %138 = tpu.matmul %136, %137, %cst_43 {dimension_numbers = #tpu.dot_dimension_numbers<[1], [0], [0], [1], [0, 0, 1, 1], [], []>} : vector<8x128xbf16>, vector<128x512xbf16>, vector<8x512xf32> -> vector<8x512xf32>
    %139 = arith.addf %135, %138 : vector<8x512xf32>
    %140 = vector.extract_strided_slice %139 {offsets = [0, 0], sizes = [8, 384], strides = [1, 1]} : vector<8x512xf32> to vector<8x384xf32>
    %141 = arith.negf %140 : vector<8x384xf32>
    %142 = math.exp %141 : vector<8x384xf32>
    %cst_44 = arith.constant 1.000000e+00 : f32
    %143 = vector.broadcast %cst_44 : f32 to vector<8x384xf32>
    %144 = arith.addf %143, %142 : vector<8x384xf32>
    %145 = arith.divf %143, %144 : vector<8x384xf32>
    %146 = vector.extract_strided_slice %145 {offsets = [0, 0], sizes = [8, 128], strides = [1, 1]} : vector<8x384xf32> to vector<8x128xf32>
    %147 = vector.extract_strided_slice %145 {offsets = [0, 128], sizes = [8, 128], strides = [1, 1]} : vector<8x384xf32> to vector<8x128xf32>
    %148 = vector.extract_strided_slice %145 {offsets = [0, 256], sizes = [8, 128], strides = [1, 1]} : vector<8x384xf32> to vector<8x128xf32>
    %149 = vector.extract_strided_slice %139 {offsets = [0, 384], sizes = [8, 128], strides = [1, 1]} : vector<8x512xf32> to vector<8x128xf32>
    %150 = math.tanh %149 : vector<8x128xf32>
    %151 = arith.mulf %147, %132 : vector<8x128xf32>
    %152 = arith.mulf %146, %150 : vector<8x128xf32>
    %153 = arith.addf %151, %152 : vector<8x128xf32>
    %154 = math.tanh %153 : vector<8x128xf32>
    %155 = arith.mulf %148, %154 : vector<8x128xf32>
    %c56 = arith.constant 56 : index
    %c0_45 = arith.constant 0 : index
    %156 = vector.load %arg9[%c56, %c0_45] : memref<64x512xf32, #tpu.memory_space<vmem>>, vector<8x512xf32>
    %157 = arith.truncf %155 : vector<8x128xf32> to vector<8x128xbf16>
    %c0_46 = arith.constant 0 : index
    %c0_47 = arith.constant 0 : index
    %158 = vector.load %arg2[%c0_46, %c0_47] : memref<128x512xbf16, #tpu.memory_space<vmem>>, vector<128x512xbf16>
    %cst_48 = arith.constant dense<0.000000e+00> : vector<8x512xf32>
    %159 = tpu.matmul %157, %158, %cst_48 {dimension_numbers = #tpu.dot_dimension_numbers<[1], [0], [0], [1], [0, 0, 1, 1], [], []>} : vector<8x128xbf16>, vector<128x512xbf16>, vector<8x512xf32> -> vector<8x512xf32>
    %160 = arith.addf %156, %159 : vector<8x512xf32>
    %161 = vector.extract_strided_slice %160 {offsets = [0, 0], sizes = [8, 384], strides = [1, 1]} : vector<8x512xf32> to vector<8x384xf32>
    %162 = arith.negf %161 : vector<8x384xf32>
    %163 = math.exp %162 : vector<8x384xf32>
    %cst_49 = arith.constant 1.000000e+00 : f32
    %164 = vector.broadcast %cst_49 : f32 to vector<8x384xf32>
    %165 = arith.addf %164, %163 : vector<8x384xf32>
    %166 = arith.divf %164, %165 : vector<8x384xf32>
    %167 = vector.extract_strided_slice %166 {offsets = [0, 0], sizes = [8, 128], strides = [1, 1]} : vector<8x384xf32> to vector<8x128xf32>
    %168 = vector.extract_strided_slice %166 {offsets = [0, 128], sizes = [8, 128], strides = [1, 1]} : vector<8x384xf32> to vector<8x128xf32>
    %169 = vector.extract_strided_slice %166 {offsets = [0, 256], sizes = [8, 128], strides = [1, 1]} : vector<8x384xf32> to vector<8x128xf32>
    %170 = vector.extract_strided_slice %160 {offsets = [0, 384], sizes = [8, 128], strides = [1, 1]} : vector<8x512xf32> to vector<8x128xf32>
    %171 = math.tanh %170 : vector<8x128xf32>
    %172 = arith.mulf %168, %153 : vector<8x128xf32>
    %173 = arith.mulf %167, %171 : vector<8x128xf32>
    %174 = arith.addf %172, %173 : vector<8x128xf32>
    %175 = math.tanh %174 : vector<8x128xf32>
    %176 = arith.mulf %169, %175 : vector<8x128xf32>
    %c0_50 = arith.constant 0 : index
    %c0_51 = arith.constant 0 : index
    %177 = vector.load %arg7[%c0_50, %c0_51] : memref<8x128xf32, #tpu.memory_space<vmem>>, vector<8x128xf32>
    tpu.vector_store %arg7[%c0_50, %c0_51], %176 {strides = array<i32>} : memref<8x128xf32, #tpu.memory_space<vmem>>, vector<8x128xf32>,
    %c0_52 = arith.constant 0 : index
    %c0_53 = arith.constant 0 : index
    %178 = vector.load %arg8[%c0_52, %c0_53] : memref<8x128xf32, #tpu.memory_space<vmem>>, vector<8x128xf32>
    tpu.vector_store %arg8[%c0_52, %c0_53], %174 {strides = array<i32>} : memref<8x128xf32, #tpu.memory_space<vmem>>, vector<8x128xf32>,
    %179 = arith.truncf %176 : vector<8x128xf32> to vector<8x128xbf16>
    %c0_54 = arith.constant 0 : index
    %c0_55 = arith.constant 0 : index
    %180 = vector.load %arg4[%c0_54, %c0_55] : memref<128x128xbf16, #tpu.memory_space<vmem>>, vector<128x128xbf16>
    %cst_56 = arith.constant dense<0.000000e+00> : vector<8x128xf32>
    %181 = tpu.matmul %179, %180, %cst_56 {dimension_numbers = #tpu.dot_dimension_numbers<[1], [0], [0], [1], [0, 0, 1, 1], [], []>} : vector<8x128xbf16>, vector<128x128xbf16>, vector<8x128xf32> -> vector<8x128xf32>
    %c0_57 = arith.constant 0 : index
    %c0_58 = arith.constant 0 : index
    %182 = vector.load %arg5[%c0_57, %c0_58] : memref<1x128xf32, #tpu.memory_space<vmem>>, vector<1x128xf32>
    %183 = vector.broadcast %182 : vector<1x128xf32> to vector<8x128xf32>
    %184 = arith.addf %181, %183 : vector<8x128xf32>
    %c0_59 = arith.constant 0 : index
    %c0_60 = arith.constant 0 : index
    %185 = vector.load %arg6[%c0_59, %c0_60] : memref<8x128xf32, #tpu.memory_space<vmem>>, vector<8x128xf32>
    tpu.vector_store %arg6[%c0_59, %c0_60], %184 {strides = array<i32>} : memref<8x128xf32, #tpu.memory_space<vmem>>, vector<8x128xf32>,
    return
  }
}

</mosaic_0001>

<llo_original>
// kernel: lstm_model_forward.1
$region0: #{lstm_model_forward.1}
  #allocation0 [shape = 'u32[]', space=smem, size = 0x4, offset = 0x4, fixed_abs, tag = 'smem constant byte address 0x4 - core index']
  #allocation1 [shape = 'u32[144,128]{1,0:T(1,128)}', space=vmem, size = 0x12000, scoped, tag = 'internal scratch']
  #allocation2 [shape = 'f32[64,512]{1,0:T(8,128)}', space=vmem, size = 0x20000, scoped, tag = 'scratch operand']
  %s0 = inlined_call_operand.vmem [shape: bf16[64,5], index: 0, kind: input, shape index: {}]
  %s1 = inlined_call_operand.vmem [shape: bf16[5,512], index: 1, kind: input, shape index: {}]
  %s2 = inlined_call_operand.hbm [shape: bf16[128,512], index: 2, kind: input, shape index: {}]
  %s3 = inlined_call_operand.hbm [shape: f32[1,512], index: 3, kind: input, shape index: {}]
  %s4 = inlined_call_operand.vmem [shape: bf16[128,128], index: 4, kind: input, shape index: {}]
  %s5 = inlined_call_operand.vmem [shape: f32[1,128], index: 5, kind: input, shape index: {}]
  %s6 = inlined_call_operand.vmem [shape: f32[8,128], index: 6, kind: output, shape index: {0}]
  %s7 = inlined_call_operand.vmem [shape: f32[8,128], index: 7, kind: output, shape index: {1}]
  %s8 = inlined_call_operand.vmem [shape: f32[8,128], index: 8, kind: output, shape index: {2}]
  %9 = xla_tuple %s6, %s7, %s8
  %s10 = sld [smem:[#allocation0]]
  $region58: #{lstm_model_forward.1} parent=0
    _
  %s12 = ssub.s32 1, %s10
  %s13 = scalar_select 0, %s12, %s10
  $region1: #{lstm_model_forward.1} parent=0
    #allocation3 [shape = 'u8[131072]{0}', space=vmem, size = 0x20000, scoped, tag = 'input window, operand 2, single buffered']
    #allocation4 [shape = 's32[1]{0}', space=sflag, size = 0x4, scoped, tag = 'scoped memory for lstm_model_forward.1']
    #allocation5 [shape = 'u8[2048]{0}', space=vmem, size = 0x800, scoped, tag = 'input window, operand 3, single buffered']
    #allocation6 [shape = 's32[1]{0}', space=sflag, size = 0x4, scoped, tag = 'scoped memory for lstm_model_forward.1']
    %14 = vsyncpa [#allocation4], 0
    %15 = vsyncpa [#allocation6], 0
    // Predicated region
    $region2: #{lstm_model_forward.1} parent=1 // pred_check
      _
    $region3: #{lstm_model_forward.1} parent=1 // pred_check_branch
      %17 = sbr.rel (0) target = $region5
    $region4: #{lstm_model_forward.1} parent=1 // pred_region
      _
    $region5: #{lstm_model_forward.1} parent=1 // pred_fallthru
      _
    // Predicated region
    $region6: #{lstm_model_forward.1} parent=1 // pred_check
      _
    $region7: #{lstm_model_forward.1} parent=1 // pred_check_branch
      %19 = sbr.rel (0) target = $region9
    $region8: #{lstm_model_forward.1} parent=1 // pred_region
      _
    $region9: #{lstm_model_forward.1} parent=1 // pred_fallthru
      _
    // Predicated region
    $region10: #{lstm_model_forward.1} parent=1 // pred_check
      _
    $region11: #{lstm_model_forward.1} parent=1 // pred_check_branch
      %21 = sbr.rel (0) target = $region13
    $region12: #{lstm_model_forward.1} parent=1 // pred_region
      %s23 = ssub.s32 4096, 4096
      %24 = vsyncadd [#allocation4], %s23
      %s25 = sshll.u32 [#allocation3], 4
      %s26 = int_to_ptr.vmem [resolvable:$true] %s25
      %31 = dma.hbm_to_vmem [thread:$0]  %s2, 4096, %s26, [#allocation4], 256, 256, 16
    $region13: #{lstm_model_forward.1} parent=1 // pred_fallthru
      _
    // Predicated region
    $region14: #{lstm_model_forward.1} parent=1 // pred_check
      _
    $region15: #{lstm_model_forward.1} parent=1 // pred_check_branch
      %33 = sbr.rel (0) target = $region17
    $region16: #{lstm_model_forward.1} parent=1 // pred_region
      %s35 = ssub.s32 64, 64
      %36 = vsyncadd [#allocation6], %s35
      %s38 = sshll.u32 [#allocation5], 4
      %s39 = int_to_ptr.vmem [resolvable:$true] %s38
      %41 = dma.hbm_to_vmem [thread:$0]  %s3, 64, %s39, [#allocation6]
    $region17: #{lstm_model_forward.1} parent=1 // pred_fallthru
      _
    // Predicated region
    $region18: #{lstm_model_forward.1} parent=1 // pred_check
      _
    $region19: #{lstm_model_forward.1} parent=1 // pred_check_branch
      %43 = sbr.rel (0) target = $region21
    $region20: #{lstm_model_forward.1} parent=1 // pred_region
      _
    $region21: #{lstm_model_forward.1} parent=1 // pred_fallthru
      _
    // Predicated region
    $region22: #{lstm_model_forward.1} parent=1 // pred_check
      _
    $region23: #{lstm_model_forward.1} parent=1 // pred_check_branch
      %45 = sbr.rel (0) target = $region25
    $region24: #{lstm_model_forward.1} parent=1 // pred_region
      _
    $region25: #{lstm_model_forward.1} parent=1 // pred_fallthru
      _
    // Predicated region
    $region26: #{lstm_model_forward.1} parent=1 // pred_check
      _
    $region27: #{lstm_model_forward.1} parent=1 // pred_check_branch
      %47 = sbr.rel (0) target = $region29
    $region28: #{lstm_model_forward.1} parent=1 // pred_region
      %48 = dma.done [#allocation4], 4096
    $region29: #{lstm_model_forward.1} parent=1 // pred_fallthru
      _
    // Predicated region
    $region30: #{lstm_model_forward.1} parent=1 // pred_check
      _
    $region31: #{lstm_model_forward.1} parent=1 // pred_check_branch
      %50 = sbr.rel (0) target = $region33
    $region32: #{lstm_model_forward.1} parent=1 // pred_region
      %51 = dma.done [#allocation6], 64
    $region33: #{lstm_model_forward.1} parent=1 // pred_fallthru
      _
    %v53 = vld [vmem:[%s0] sm:$0xf]
    %v54 = vld [vmem:[%s0 + $0x4] sm:$0xf]
    %v55 = vld [vmem:[%s0 + $0x8] sm:$0xf]
    %v56 = vld [vmem:[%s0 + $0xc] sm:$0xf]
    %v57 = vld [vmem:[%s0 + $0x10] sm:$0xf]
    %v58 = vld [vmem:[%s0 + $0x14] sm:$0xf]
    %v59 = vld [vmem:[%s0 + $0x18] sm:$0xf]
    %v60 = vld [vmem:[%s0 + $0x1c] sm:$0xf]
    %v61 = vld [vmem:[%s1] sm:$0x77]
    %v62 = vld [vmem:[%s1 + $0x8] sm:$0x77]
    %v63 = vld [vmem:[#allocation5] sm:$0xf]
    %v65 = vlaneseq
    %v66 = vshrl.u32 %v65, 7
    %v67 = vsub.s32 0, %v66
    %v68 = vrot.slane %v63, %v67
    %v69 = vlaneseq
    %v70 = vshrl.u32 %v69, 7
    %v71 = vsub.s32 1, %v70
    %v72 = vrot.slane %v63, %v71
    %v73 = vlaneseq
    %v74 = vshrl.u32 %v73, 7
    %v75 = vsub.s32 2, %v74
    %v76 = vrot.slane %v63, %v75
    %v77 = vlaneseq
    %v78 = vshrl.u32 %v77, 7
    %v79 = vsub.s32 3, %v78
    %v80 = vrot.slane %v63, %v79
    %v93 = vunpack.c.l.b16 %v53
    %v94 = vunpack.c.l.b16 %v54
    %v95 = vunpack.c.l.b16 %v55
    %v96 = vunpack.c.l.b16 %v56
    %v97 = vunpack.c.l.b16 %v57
    %v98 = vunpack.c.l.b16 %v58
    %v99 = vunpack.c.l.b16 %v59
    %v100 = vunpack.c.l.b16 %v60
    %v101 = vpack.c.b16 %v94, %v93
    %v102 = vpack.c.b16 %v96, %v95
    %v103 = vpack.c.b16 %v98, %v97
    %v104 = vpack.c.b16 %v100, %v99
    %v107 = vunpack.c.l.b16 %v61
    %v108 = vunpack.c.h.b16 %v61
    %v109 = vunpack.c.l.b16 %v62
    %v110 = vunpack.c.h.b16 %v62
    %v111 = vpack.c.b16 %v107, %v107
    %v112 = vpack.c.b16 %v108, %v108
    %v113 = vpack.c.b16 %v109, %v109
    %v114 = vpack.c.b16 %v110, %v110
    %vm115 = vcmask 39936
    %v117 = vsel %vm115, %v101, 0
    %v120 = vsel %vm115, %v102, 0
    %v123 = vsel %vm115, %v103, 0
    %v126 = vsel %vm115, %v104, 0
    %vm128 = vcmask 1041408
    %vm129 = vcmask 1042432
    %v130 = vsel %vm128, 4294967295, 65535
    %v131 = vsel %vm129, %v130, 0
    %v133 = vand.u32 %v111, %v131
    %v136 = vand.u32 %v112, %v131
    %v139 = vand.u32 %v113, %v131
    %v142 = vand.u32 %v114, %v131
    %144 = vmatprep.subr.bf16.mxu0 %v136
    %145 = vmatpush1.bf16.msra.mxu0 %v133
    %146 = vmatprep.subr.bf16.mxu0 0
    %147 = vmatpush1.bf16.msra.mxu0 0
    %148 = vmatprep.subr.bf16.mxu0 0
    %149 = vmatpush1.bf16.msra.mxu0 0
    %150 = vmatprep.subr.bf16.mxu0 0
    %151 = vmatpush1.bf16.msra.mxu0 0
    %152 = vmatprep.subr.bf16.mxu0 0
    %153 = vmatpush1.bf16.msra.mxu0 0
    %154 = vmatprep.subr.bf16.mxu0 0
    %155 = vmatpush1.bf16.msra.mxu0 0
    %156 = vmatprep.subr.bf16.mxu0 0
    %157 = vmatpush1.bf16.msra.mxu0 0
    %158 = vmatprep.subr.bf16.mxu0 0
    %159 = vmatpush1.bf16.msra.mxu0 0
    %160 = vmatprep.subr.bf16.mxu0 0
    %161 = vmatpush1.bf16.msra.mxu0 0
    %162 = vmatprep.subr.bf16.mxu0 0
    %163 = vmatpush1.bf16.msra.mxu0 0
    %164 = vmatprep.subr.bf16.mxu0 0
    %165 = vmatpush1.bf16.msra.mxu0 0
    %166 = vmatprep.subr.bf16.mxu0 0
    %167 = vmatpush1.bf16.msra.mxu0 0
    %168 = vmatprep.subr.bf16.mxu0 0
    %169 = vmatpush1.bf16.msra.mxu0 0
    %170 = vmatprep.subr.bf16.mxu0 0
    %171 = vmatpush1.bf16.msra.mxu0 0
    %172 = vmatprep.subr.bf16.mxu0 0
    %173 = vmatpush1.bf16.msra.mxu0 0
    %174 = vmatprep.subr.bf16.mxu0 0
    %175 = vmatpush1.bf16.msra.mxu0 0
    %176 = vmatprep.mubr.bf16.mxu0 0
    %177 = vmatmul.mubr.bf16.gmra.mrb[0].mxu0 %v117
    %v178 = vpop.f32.mrb[0].mxu0
    %v179 = vadd.f32 %v68, %v178
    %v180 = vpop.f32.mrb[0].mxu0
    %v181 = vadd.f32 %v72, %v180
    %v182 = vpop.f32.mrb[0].mxu0
    %v183 = vadd.f32 %v68, %v182
    %v184 = vpop.f32.mrb[0].mxu0
    %v185 = vadd.f32 %v72, %v184
    %186 = vmatprep.mubr.bf16.mxu0 0
    %187 = vmatmul.mubr.bf16.gmra.mrb[0].mxu0 %v120
    %v188 = vpop.f32.mrb[0].mxu0
    %v189 = vadd.f32 %v68, %v188
    %v190 = vpop.f32.mrb[0].mxu0
    %v191 = vadd.f32 %v72, %v190
    %v192 = vpop.f32.mrb[0].mxu0
    %v193 = vadd.f32 %v68, %v192
    %v194 = vpop.f32.mrb[0].mxu0
    %v195 = vadd.f32 %v72, %v194
    %196 = vmatprep.mubr.bf16.mxu0 0
    %197 = vmatmul.mubr.bf16.gmra.mrb[0].mxu0 %v123
    %v198 = vpop.f32.mrb[0].mxu0
    %v199 = vadd.f32 %v68, %v198
    %v200 = vpop.f32.mrb[0].mxu0
    %v201 = vadd.f32 %v72, %v200
    %v202 = vpop.f32.mrb[0].mxu0
    %v203 = vadd.f32 %v68, %v202
    %v204 = vpop.f32.mrb[0].mxu0
    %v205 = vadd.f32 %v72, %v204
    %206 = vmatprep.mubr.bf16.mxu0 0
    %207 = vmatmul.mubr.bf16.gmra.mrb[0].mxu0 %v126
    %v208 = vpop.f32.mrb[0].mxu0
    %v209 = vadd.f32 %v68, %v208
    %v210 = vpop.f32.mrb[0].mxu0
    %v211 = vadd.f32 %v72, %v210
    %v212 = vpop.f32.mrb[0].mxu0
    %v213 = vadd.f32 %v68, %v212
    %v214 = vpop.f32.mrb[0].mxu0
    %v215 = vadd.f32 %v72, %v214
    %216 = vdwg.mxu0
    %217 = vmatprep.subr.bf16.mxu0 %v142
    %218 = vmatpush1.bf16.msra.mxu0 %v139
    %219 = vmatprep.subr.bf16.mxu0 0
    %220 = vmatpush1.bf16.msra.mxu0 0
    %221 = vmatprep.subr.bf16.mxu0 0
    %222 = vmatpush1.bf16.msra.mxu0 0
    %223 = vmatprep.subr.bf16.mxu0 0
    %224 = vmatpush1.bf16.msra.mxu0 0
    %225 = vmatprep.subr.bf16.mxu0 0
    %226 = vmatpush1.bf16.msra.mxu0 0
    %227 = vmatprep.subr.bf16.mxu0 0
    %228 = vmatpush1.bf16.msra.mxu0 0
    %229 = vmatprep.subr.bf16.mxu0 0
    %230 = vmatpush1.bf16.msra.mxu0 0
    %231 = vmatprep.subr.bf16.mxu0 0
    %232 = vmatpush1.bf16.msra.mxu0 0
    %233 = vmatprep.subr.bf16.mxu0 0
    %234 = vmatpush1.bf16.msra.mxu0 0
    %235 = vmatprep.subr.bf16.mxu0 0
    %236 = vmatpush1.bf16.msra.mxu0 0
    %237 = vmatprep.subr.bf16.mxu0 0
    %238 = vmatpush1.bf16.msra.mxu0 0
    %239 = vmatprep.subr.bf16.mxu0 0
    %240 = vmatpush1.bf16.msra.mxu0 0
    %241 = vmatprep.subr.bf16.mxu0 0
    %242 = vmatpush1.bf16.msra.mxu0 0
    %243 = vmatprep.subr.bf16.mxu0 0
    %244 = vmatpush1.bf16.msra.mxu0 0
    %245 = vmatprep.subr.bf16.mxu0 0
    %246 = vmatpush1.bf16.msra.mxu0 0
    %247 = vmatprep.subr.bf16.mxu0 0
    %248 = vmatpush1.bf16.msra.mxu0 0
    %249 = vmatprep.mubr.bf16.mxu0 0
    %250 = vmatmul.mubr.bf16.gmra.mrb[0].mxu0 %v117
    %v251 = vpop.f32.mrb[0].mxu0
    %v252 = vadd.f32 %v76, %v251
    %v253 = vpop.f32.mrb[0].mxu0
    %v254 = vadd.f32 %v80, %v253
    %v255 = vpop.f32.mrb[0].mxu0
    %v256 = vadd.f32 %v76, %v255
    %v257 = vpop.f32.mrb[0].mxu0
    %v258 = vadd.f32 %v80, %v257
    %259 = vmatprep.mubr.bf16.mxu0 0
    %260 = vmatmul.mubr.bf16.gmra.mrb[0].mxu0 %v120
    %v261 = vpop.f32.mrb[0].mxu0
    %v262 = vadd.f32 %v76, %v261
    %v263 = vpop.f32.mrb[0].mxu0
    %v264 = vadd.f32 %v80, %v263
    %v265 = vpop.f32.mrb[0].mxu0
    %v266 = vadd.f32 %v76, %v265
    %v267 = vpop.f32.mrb[0].mxu0
    %v268 = vadd.f32 %v80, %v267
    %269 = vmatprep.mubr.bf16.mxu0 0
    %270 = vmatmul.mubr.bf16.gmra.mrb[0].mxu0 %v123
    %v271 = vpop.f32.mrb[0].mxu0
    %v272 = vadd.f32 %v76, %v271
    %v273 = vpop.f32.mrb[0].mxu0
    %v274 = vadd.f32 %v80, %v273
    %v275 = vpop.f32.mrb[0].mxu0
    %v276 = vadd.f32 %v76, %v275
    %v277 = vpop.f32.mrb[0].mxu0
    %v278 = vadd.f32 %v80, %v277
    %279 = vmatprep.mubr.bf16.mxu0 0
    %280 = vmatmul.mubr.bf16.gmra.mrb[0].mxu0 %v126
    %v281 = vpop.f32.mrb[0].mxu0
    %v282 = vadd.f32 %v76, %v281
    %v283 = vpop.f32.mrb[0].mxu0
    %v284 = vadd.f32 %v80, %v283
    %v285 = vpop.f32.mrb[0].mxu0
    %v286 = vadd.f32 %v76, %v285
    %v287 = vpop.f32.mrb[0].mxu0
    %v288 = vadd.f32 %v80, %v287
    %289 = vdwg.mxu0
    %290 = vst [vmem:[#allocation2] sm:$0xff] %v179
    %291 = vst [vmem:[#allocation2 + $0x8] sm:$0xff] %v181
    %292 = vst [vmem:[#allocation2 + $0x10] sm:$0xff] %v252
    %293 = vst [vmem:[#allocation2 + $0x18] sm:$0xff] %v254
    %294 = vst [vmem:[#allocation2 + $0x20] sm:$0xff] %v183
    %295 = vst [vmem:[#allocation2 + $0x28] sm:$0xff] %v185
    %296 = vst [vmem:[#allocation2 + $0x30] sm:$0xff] %v256
    %297 = vst [vmem:[#allocation2 + $0x38] sm:$0xff] %v258
    %298 = vst [vmem:[#allocation2 + $0x40] sm:$0xff] %v189
    %299 = vst [vmem:[#allocation2 + $0x48] sm:$0xff] %v191
    %300 = vst [vmem:[#allocation2 + $0x50] sm:$0xff] %v262
    %301 = vst [vmem:[#allocation2 + $0x58] sm:$0xff] %v264
    %302 = vst [vmem:[#allocation2 + $0x60] sm:$0xff] %v193
    %303 = vst [vmem:[#allocation2 + $0x68] sm:$0xff] %v195
    %304 = vst [vmem:[#allocation2 + $0x70] sm:$0xff] %v266
    %305 = vst [vmem:[#allocation2 + $0x78] sm:$0xff] %v268
    %306 = vst [vmem:[#allocation2 + $0x80] sm:$0xff] %v199
    %307 = vst [vmem:[#allocation2 + $0x88] sm:$0xff] %v201
    %308 = vst [vmem:[#allocation2 + $0x90] sm:$0xff] %v272
    %309 = vst [vmem:[#allocation2 + $0x98] sm:$0xff] %v274
    %310 = vst [vmem:[#allocation2 + $0xa0] sm:$0xff] %v203
    %311 = vst [vmem:[#allocation2 + $0xa8] sm:$0xff] %v205
    %312 = vst [vmem:[#allocation2 + $0xb0] sm:$0xff] %v276
    %313 = vst [vmem:[#allocation2 + $0xb8] sm:$0xff] %v278
    %314 = vst [vmem:[#allocation2 + $0xc0] sm:$0xff] %v209
    %315 = vst [vmem:[#allocation2 + $0xc8] sm:$0xff] %v211
    %316 = vst [vmem:[#allocation2 + $0xd0] sm:$0xff] %v282
    %317 = vst [vmem:[#allocation2 + $0xd8] sm:$0xff] %v284
    %318 = vst [vmem:[#allocation2 + $0xe0] sm:$0xff] %v213
    %319 = vst [vmem:[#allocation2 + $0xe8] sm:$0xff] %v215
    %320 = vst [vmem:[#allocation2 + $0xf0] sm:$0xff] %v286
    %321 = vst [vmem:[#allocation2 + $0xf8] sm:$0xff] %v288
    %v322 = vld [vmem:[#allocation2] sm:$0xff]
    %v323 = vld [vmem:[#allocation2 + $0x8] sm:$0xff]
    %v324 = vld [vmem:[#allocation2 + $0x10] sm:$0xff]
    %v325 = vld [vmem:[#allocation2 + $0x18] sm:$0xff]
    %v326 = vld [vmem:[#allocation3] sm:$0xff]
    %v327 = vld [vmem:[#allocation3 + $0x8] sm:$0xff]
    %v328 = vld [vmem:[#allocation3 + $0x10] sm:$0xff]
    %v329 = vld [vmem:[#allocation3 + $0x18] sm:$0xff]
    %v330 = vld [vmem:[#allocation3 + $0x20] sm:$0xff]
    %v331 = vld [vmem:[#allocation3 + $0x28] sm:$0xff]
    %v332 = vld [vmem:[#allocation3 + $0x30] sm:$0xff]
    %v333 = vld [vmem:[#allocation3 + $0x38] sm:$0xff]
    %v334 = vld [vmem:[#allocation3 + $0x40] sm:$0xff]
    %v335 = vld [vmem:[#allocation3 + $0x48] sm:$0xff]
    %v336 = vld [vmem:[#allocation3 + $0x50] sm:$0xff]
    %v337 = vld [vmem:[#allocation3 + $0x58] sm:$0xff]
    %v338 = vld [vmem:[#allocation3 + $0x60] sm:$0xff]
    %v339 = vld [vmem:[#allocation3 + $0x68] sm:$0xff]
    %v340 = vld [vmem:[#allocation3 + $0x70] sm:$0xff]
    %v341 = vld [vmem:[#allocation3 + $0x78] sm:$0xff]
    %v342 = vld [vmem:[#allocation3 + $0x80] sm:$0xff]
    %v343 = vld [vmem:[#allocation3 + $0x88] sm:$0xff]
    %v344 = vld [vmem:[#allocation3 + $0x90] sm:$0xff]
    %v345 = vld [vmem:[#allocation3 + $0x98] sm:$0xff]
    %v346 = vld [vmem:[#allocation3 + $0xa0] sm:$0xff]
    %v347 = vld [vmem:[#allocation3 + $0xa8] sm:$0xff]
    %v348 = vld [vmem:[#allocation3 + $0xb0] sm:$0xff]
    %v349 = vld [vmem:[#allocation3 + $0xb8] sm:$0xff]
    %v350 = vld [vmem:[#allocation3 + $0xc0] sm:$0xff]
    %v351 = vld [vmem:[#allocation3 + $0xc8] sm:$0xff]
    %v352 = vld [vmem:[#allocation3 + $0xd0] sm:$0xff]
    %v353 = vld [vmem:[#allocation3 + $0xd8] sm:$0xff]
    %v354 = vld [vmem:[#allocation3 + $0xe0] sm:$0xff]
    %v355 = vld [vmem:[#allocation3 + $0xe8] sm:$0xff]
    %v356 = vld [vmem:[#allocation3 + $0xf0] sm:$0xff]
    %v357 = vld [vmem:[#allocation3 + $0xf8] sm:$0xff]
    %v390 = vunpack.c.l.b16 %v326
    %v391 = vunpack.c.h.b16 %v326
    %v392 = vunpack.c.l.b16 %v327
    %v393 = vunpack.c.h.b16 %v327
    %v394 = vunpack.c.l.b16 %v328
    %v395 = vunpack.c.h.b16 %v328
    %v396 = vunpack.c.l.b16 %v329
    %v397 = vunpack.c.h.b16 %v329
    %v398 = vunpack.c.l.b16 %v330
    %v399 = vunpack.c.h.b16 %v330
    %v400 = vunpack.c.l.b16 %v331
    %v401 = vunpack.c.h.b16 %v331
    %v402 = vunpack.c.l.b16 %v332
    %v403 = vunpack.c.h.b16 %v332
    %v404 = vunpack.c.l.b16 %v333
    %v405 = vunpack.c.h.b16 %v333
    %v406 = vunpack.c.l.b16 %v334
    %v407 = vunpack.c.h.b16 %v334
    %v408 = vunpack.c.l.b16 %v335
    %v409 = vunpack.c.h.b16 %v335
    %v410 = vunpack.c.l.b16 %v336
    %v411 = vunpack.c.h.b16 %v336
    %v412 = vunpack.c.l.b16 %v337
    %v413 = vunpack.c.h.b16 %v337
    %v414 = vunpack.c.l.b16 %v338
    %v415 = vunpack.c.h.b16 %v338
    %v416 = vunpack.c.l.b16 %v339
    %v417 = vunpack.c.h.b16 %v339
    %v418 = vunpack.c.l.b16 %v340
    %v419 = vunpack.c.h.b16 %v340
    %v420 = vunpack.c.l.b16 %v341
    %v421 = vunpack.c.h.b16 %v341
    %v422 = vunpack.c.l.b16 %v342
    %v423 = vunpack.c.h.b16 %v342
    %v424 = vunpack.c.l.b16 %v343
    %v425 = vunpack.c.h.b16 %v343
    %v426 = vunpack.c.l.b16 %v344
    %v427 = vunpack.c.h.b16 %v344
    %v428 = vunpack.c.l.b16 %v345
    %v429 = vunpack.c.h.b16 %v345
    %v430 = vunpack.c.l.b16 %v346
    %v431 = vunpack.c.h.b16 %v346
    %v432 = vunpack.c.l.b16 %v347
    %v433 = vunpack.c.h.b16 %v347
    %v434 = vunpack.c.l.b16 %v348
    %v435 = vunpack.c.h.b16 %v348
    %v436 = vunpack.c.l.b16 %v349
    %v437 = vunpack.c.h.b16 %v349
    %v438 = vunpack.c.l.b16 %v350
    %v439 = vunpack.c.h.b16 %v350
    %v440 = vunpack.c.l.b16 %v351
    %v441 = vunpack.c.h.b16 %v351
    %v442 = vunpack.c.l.b16 %v352
    %v443 = vunpack.c.h.b16 %v352
    %v444 = vunpack.c.l.b16 %v353
    %v445 = vunpack.c.h.b16 %v353
    %v446 = vunpack.c.l.b16 %v354
    %v447 = vunpack.c.h.b16 %v354
    %v448 = vunpack.c.l.b16 %v355
    %v449 = vunpack.c.h.b16 %v355
    %v450 = vunpack.c.l.b16 %v356
    %v451 = vunpack.c.h.b16 %v356
    %v452 = vunpack.c.l.b16 %v357
    %v453 = vunpack.c.h.b16 %v357
    %v454 = vpack.c.b16 %v394, %v390
    %v455 = vpack.c.b16 %v395, %v391
    %v456 = vpack.c.b16 %v396, %v392
    %v457 = vpack.c.b16 %v397, %v393
    %v458 = vpack.c.b16 %v402, %v398
    %v459 = vpack.c.b16 %v403, %v399
    %v460 = vpack.c.b16 %v404, %v400
    %v461 = vpack.c.b16 %v405, %v401
    %v462 = vpack.c.b16 %v410, %v406
    %v463 = vpack.c.b16 %v411, %v407
    %v464 = vpack.c.b16 %v412, %v408
    %v465 = vpack.c.b16 %v413, %v409
    %v466 = vpack.c.b16 %v418, %v414
    %v467 = vpack.c.b16 %v419, %v415
    %v468 = vpack.c.b16 %v420, %v416
    %v469 = vpack.c.b16 %v421, %v417
    %v470 = vpack.c.b16 %v426, %v422
    %v471 = vpack.c.b16 %v427, %v423
    %v472 = vpack.c.b16 %v428, %v424
    %v473 = vpack.c.b16 %v429, %v425
    %v474 = vpack.c.b16 %v434, %v430
    %v475 = vpack.c.b16 %v435, %v431
    %v476 = vpack.c.b16 %v436, %v432
    %v477 = vpack.c.b16 %v437, %v433
    %v478 = vpack.c.b16 %v442, %v438
    %v479 = vpack.c.b16 %v443, %v439
    %v480 = vpack.c.b16 %v444, %v440
    %v481 = vpack.c.b16 %v445, %v441
    %v482 = vpack.c.b16 %v450, %v446
    %v483 = vpack.c.b16 %v451, %v447
    %v484 = vpack.c.b16 %v452, %v448
    %v485 = vpack.c.b16 %v453, %v449
    %518 = vmatprep.subr.bf16.mxu0 %v455
    %519 = vmatpush1.bf16.msra.mxu0 %v454
    %520 = vmatprep.subr.bf16.mxu0 %v459
    %521 = vmatpush1.bf16.msra.mxu0 %v458
    %522 = vmatprep.subr.bf16.mxu0 %v463
    %523 = vmatpush1.bf16.msra.mxu0 %v462
    %524 = vmatprep.subr.bf16.mxu0 %v467
    %525 = vmatpush1.bf16.msra.mxu0 %v466
    %526 = vmatprep.subr.bf16.mxu0 %v471
    %527 = vmatpush1.bf16.msra.mxu0 %v470
    %528 = vmatprep.subr.bf16.mxu0 %v475
    %529 = vmatpush1.bf16.msra.mxu0 %v474
    %530 = vmatprep.subr.bf16.mxu0 %v479
    %531 = vmatpush1.bf16.msra.mxu0 %v478
    %532 = vmatprep.subr.bf16.mxu0 %v483
    %533 = vmatpush1.bf16.msra.mxu0 %v482
    %534 = vmatprep.subr.bf16.mxu0 0
    %535 = vmatpush1.bf16.msra.mxu0 0
    %536 = vmatprep.subr.bf16.mxu0 0
    %537 = vmatpush1.bf16.msra.mxu0 0
    %538 = vmatprep.subr.bf16.mxu0 0
    %539 = vmatpush1.bf16.msra.mxu0 0
    %540 = vmatprep.subr.bf16.mxu0 0
    %541 = vmatpush1.bf16.msra.mxu0 0
    %542 = vmatprep.subr.bf16.mxu0 0
    %543 = vmatpush1.bf16.msra.mxu0 0
    %544 = vmatprep.subr.bf16.mxu0 0
    %545 = vmatpush1.bf16.msra.mxu0 0
    %546 = vmatprep.subr.bf16.mxu0 0
    %547 = vmatpush1.bf16.msra.mxu0 0
    %548 = vmatprep.subr.bf16.mxu0 0
    %549 = vmatpush1.bf16.msra.mxu0 0
    %550 = vmatprep.mubr.bf16.mxu0 0
    %551 = vmatmul.mubr.bf16.gmra.mrb[0].mxu0 0
    %v552 = vpop.f32.mrb[0].mxu0
    %v553 = vadd.f32 0.0, %v552
    %v554 = vpop.f32.mrb[0].mxu0
    %v555 = vadd.f32 0.0, %v554
    %v556 = vpop.f32.mrb[0].mxu0
    %v557 = vpop.f32.mrb[0].mxu0
    %558 = vdwg.mxu0
    %559 = vmatprep.subr.bf16.mxu0 %v457
    %560 = vmatpush1.bf16.msra.mxu0 %v456
    %561 = vmatprep.subr.bf16.mxu0 %v461
    %562 = vmatpush1.bf16.msra.mxu0 %v460
    %563 = vmatprep.subr.bf16.mxu0 %v465
    %564 = vmatpush1.bf16.msra.mxu0 %v464
    %565 = vmatprep.subr.bf16.mxu0 %v469
    %566 = vmatpush1.bf16.msra.mxu0 %v468
    %567 = vmatprep.subr.bf16.mxu0 %v473
    %568 = vmatpush1.bf16.msra.mxu0 %v472
    %569 = vmatprep.subr.bf16.mxu0 %v477
    %570 = vmatpush1.bf16.msra.mxu0 %v476
    %571 = vmatprep.subr.bf16.mxu0 %v481
    %572 = vmatpush1.bf16.msra.mxu0 %v480
    %573 = vmatprep.subr.bf16.mxu0 %v485
    %574 = vmatpush1.bf16.msra.mxu0 %v484
    %575 = vmatprep.subr.bf16.mxu0 0
    %576 = vmatpush1.bf16.msra.mxu0 0
    %577 = vmatprep.subr.bf16.mxu0 0
    %578 = vmatpush1.bf16.msra.mxu0 0
    %579 = vmatprep.subr.bf16.mxu0 0
    %580 = vmatpush1.bf16.msra.mxu0 0
    %581 = vmatprep.subr.bf16.mxu0 0
    %582 = vmatpush1.bf16.msra.mxu0 0
    %583 = vmatprep.subr.bf16.mxu0 0
    %584 = vmatpush1.bf16.msra.mxu0 0
    %585 = vmatprep.subr.bf16.mxu0 0
    %586 = vmatpush1.bf16.msra.mxu0 0
    %587 = vmatprep.subr.bf16.mxu0 0
    %588 = vmatpush1.bf16.msra.mxu0 0
    %589 = vmatprep.subr.bf16.mxu0 0
    %590 = vmatpush1.bf16.msra.mxu0 0
    %591 = vmatprep.mubr.bf16.mxu0 0
    %592 = vmatmul.mubr.bf16.gmra.mrb[0].mxu0 0
    %v593 = vpop.f32.mrb[0].mxu0
    %v594 = vadd.f32 0.0, %v593
    %v595 = vpop.f32.mrb[0].mxu0
    %v596 = vadd.f32 0.0, %v595
    %v597 = vpop.f32.mrb[0].mxu0
    %v598 = vpop.f32.mrb[0].mxu0
    %599 = vdwg.mxu0
    %v600 = vadd.f32 %v322, %v553
    %v601 = vadd.f32 %v323, %v555
    %v602 = vadd.f32 %v324, %v594
    %v603 = vadd.f32 %v325, %v596
    %v604 = vxor.u32 %v600, 2147483648
    %v605 = vxor.u32 %v601, 2147483648
    %v606 = vxor.u32 %v602, 2147483648
    %v607 = vmul.f32 %v604, 1.442695
    %v608 = vpow.pop %v607
    %v609 = vmul.f32 %v605, 1.442695
    %v610 = vpow.pop %v609
    %v611 = vmul.f32 %v606, 1.442695
    %v612 = vpow.pop %v611
    %v613 = vadd.f32 %v608, 1.0
    %v614 = vadd.f32 %v610, 1.0
    %v615 = vadd.f32 %v612, 1.0
    %v616 = vrcp.pop %v613
    %v617 = vmul.f32 1.0, %v616
    %v618 = vrcp.pop %v614
    %v619 = vmul.f32 1.0, %v618
    %v620 = vrcp.pop %v615
    %v621 = vmul.f32 1.0, %v620
    %v622 = vtanh.pop %v603
    %v623 = vmul.f32 %v619, 0.0
    %v624 = vmul.f32 %v617, %v622
    %v625 = vadd.f32 %v623, %v624
    %v626 = vtanh.pop %v625
    %v627 = vmul.f32 %v621, %v626
    %v628 = vld [vmem:[#allocation2 + $0x20] sm:$0xff]
    %v629 = vld [vmem:[#allocation2 + $0x28] sm:$0xff]
    %v630 = vld [vmem:[#allocation2 + $0x30] sm:$0xff]
    %v631 = vld [vmem:[#allocation2 + $0x38] sm:$0xff]
    %v632 = vpack.c.bf16 %v627, %v627
    %633 = vmatprep.subr.bf16.mxu0 %v455
    %634 = vmatpush1.bf16.msra.mxu0 %v454
    %635 = vmatprep.subr.bf16.mxu0 %v459
    %636 = vmatpush1.bf16.msra.mxu0 %v458
    %637 = vmatprep.subr.bf16.mxu0 %v463
    %638 = vmatpush1.bf16.msra.mxu0 %v462
    %639 = vmatprep.subr.bf16.mxu0 %v467
    %640 = vmatpush1.bf16.msra.mxu0 %v466
    %641 = vmatprep.subr.bf16.mxu0 %v471
    %642 = vmatpush1.bf16.msra.mxu0 %v470
    %643 = vmatprep.subr.bf16.mxu0 %v475
    %644 = vmatpush1.bf16.msra.mxu0 %v474
    %645 = vmatprep.subr.bf16.mxu0 %v479
    %646 = vmatpush1.bf16.msra.mxu0 %v478
    %647 = vmatprep.subr.bf16.mxu0 %v483
    %648 = vmatpush1.bf16.msra.mxu0 %v482
    %649 = vmatprep.subr.bf16.mxu0 0
    %650 = vmatpush1.bf16.msra.mxu0 0
    %651 = vmatprep.subr.bf16.mxu0 0
    %652 = vmatpush1.bf16.msra.mxu0 0
    %653 = vmatprep.subr.bf16.mxu0 0
    %654 = vmatpush1.bf16.msra.mxu0 0
    %655 = vmatprep.subr.bf16.mxu0 0
    %656 = vmatpush1.bf16.msra.mxu0 0
    %657 = vmatprep.subr.bf16.mxu0 0
    %658 = vmatpush1.bf16.msra.mxu0 0
    %659 = vmatprep.subr.bf16.mxu0 0
    %660 = vmatpush1.bf16.msra.mxu0 0
    %661 = vmatprep.subr.bf16.mxu0 0
    %662 = vmatpush1.bf16.msra.mxu0 0
    %663 = vmatprep.subr.bf16.mxu0 0
    %664 = vmatpush1.bf16.msra.mxu0 0
    %665 = vmatprep.mubr.bf16.mxu0 0
    %666 = vmatmul.mubr.bf16.gmra.mrb[0].mxu0 %v632
    %v667 = vpop.f32.mrb[0].mxu0
    %v668 = vadd.f32 0.0, %v667
    %v669 = vpop.f32.mrb[0].mxu0
    %v670 = vadd.f32 0.0, %v669
    %v671 = vpop.f32.mrb[0].mxu0
    %v672 = vpop.f32.mrb[0].mxu0
    %673 = vdwg.mxu0
    %674 = vmatprep.subr.bf16.mxu0 %v457
    %675 = vmatpush1.bf16.msra.mxu0 %v456
    %676 = vmatprep.subr.bf16.mxu0 %v461
    %677 = vmatpush1.bf16.msra.mxu0 %v460
    %678 = vmatprep.subr.bf16.mxu0 %v465
    %679 = vmatpush1.bf16.msra.mxu0 %v464
    %680 = vmatprep.subr.bf16.mxu0 %v469
    %681 = vmatpush1.bf16.msra.mxu0 %v468
    %682 = vmatprep.subr.bf16.mxu0 %v473
    %683 = vmatpush1.bf16.msra.mxu0 %v472
    %684 = vmatprep.subr.bf16.mxu0 %v477
    %685 = vmatpush1.bf16.msra.mxu0 %v476
    %686 = vmatprep.subr.bf16.mxu0 %v481
    %687 = vmatpush1.bf16.msra.mxu0 %v480
    %688 = vmatprep.subr.bf16.mxu0 %v485
    %689 = vmatpush1.bf16.msra.mxu0 %v484
    %690 = vmatprep.subr.bf16.mxu0 0
    %691 = vmatpush1.bf16.msra.mxu0 0
    %692 = vmatprep.subr.bf16.mxu0 0
    %693 = vmatpush1.bf16.msra.mxu0 0
    %694 = vmatprep.subr.bf16.mxu0 0
    %695 = vmatpush1.bf16.msra.mxu0 0
    %696 = vmatprep.subr.bf16.mxu0 0
    %697 = vmatpush1.bf16.msra.mxu0 0
    %698 = vmatprep.subr.bf16.mxu0 0
    %699 = vmatpush1.bf16.msra.mxu0 0
    %700 = vmatprep.subr.bf16.mxu0 0
    %701 = vmatpush1.bf16.msra.mxu0 0
    %702 = vmatprep.subr.bf16.mxu0 0
    %703 = vmatpush1.bf16.msra.mxu0 0
    %704 = vmatprep.subr.bf16.mxu0 0
    %705 = vmatpush1.bf16.msra.mxu0 0
    %706 = vmatprep.mubr.bf16.mxu0 0
    %707 = vmatmul.mubr.bf16.gmra.mrb[0].mxu0 %v632
    %v708 = vpop.f32.mrb[0].mxu0
    %v709 = vadd.f32 0.0, %v708
    %v710 = vpop.f32.mrb[0].mxu0
    %v711 = vadd.f32 0.0, %v710
    %v712 = vpop.f32.mrb[0].mxu0
    %v713 = vpop.f32.mrb[0].mxu0
    %714 = vdwg.mxu0
    %v715 = vadd.f32 %v628, %v668
    %v716 = vadd.f32 %v629, %v670
    %v717 = vadd.f32 %v630, %v709
    %v718 = vadd.f32 %v631, %v711
    %v719 = vxor.u32 %v715, 2147483648
    %v720 = vxor.u32 %v716, 2147483648
    %v721 = vxor.u32 %v717, 2147483648
    %v722 = vmul.f32 %v719, 1.442695
    %v723 = vpow.pop %v722
    %v724 = vmul.f32 %v720, 1.442695
    %v725 = vpow.pop %v724
    %v726 = vmul.f32 %v721, 1.442695
    %v727 = vpow.pop %v726
    %v728 = vadd.f32 %v723, 1.0
    %v729 = vadd.f32 %v725, 1.0
    %v730 = vadd.f32 %v727, 1.0
    %v731 = vrcp.pop %v728
    %v732 = vmul.f32 1.0, %v731
    %v733 = vrcp.pop %v729
    %v734 = vmul.f32 1.0, %v733
    %v735 = vrcp.pop %v730
    %v736 = vmul.f32 1.0, %v735
    %v737 = vtanh.pop %v718
    %v738 = vmul.f32 %v734, %v625
    %v739 = vmul.f32 %v732, %v737
    %v740 = vadd.f32 %v738, %v739
    %v741 = vtanh.pop %v740
    %v742 = vmul.f32 %v736, %v741
    %v743 = vld [vmem:[#allocation2 + $0x40] sm:$0xff]
    %v744 = vld [vmem:[#allocation2 + $0x48] sm:$0xff]
    %v745 = vld [vmem:[#allocation2 + $0x50] sm:$0xff]
    %v746 = vld [vmem:[#allocation2 + $0x58] sm:$0xff]
    %v747 = vpack.c.bf16 %v742, %v742
    %748 = vmatprep.subr.bf16.mxu0 %v455
    %749 = vmatpush1.bf16.msra.mxu0 %v454
    %750 = vmatprep.subr.bf16.mxu0 %v459
    %751 = vmatpush1.bf16.msra.mxu0 %v458
    %752 = vmatprep.subr.bf16.mxu0 %v463
    %753 = vmatpush1.bf16.msra.mxu0 %v462
    %754 = vmatprep.subr.bf16.mxu0 %v467
    %755 = vmatpush1.bf16.msra.mxu0 %v466
    %756 = vmatprep.subr.bf16.mxu0 %v471
    %757 = vmatpush1.bf16.msra.mxu0 %v470
    %758 = vmatprep.subr.bf16.mxu0 %v475
    %759 = vmatpush1.bf16.msra.mxu0 %v474
    %760 = vmatprep.subr.bf16.mxu0 %v479
    %761 = vmatpush1.bf16.msra.mxu0 %v478
    %762 = vmatprep.subr.bf16.mxu0 %v483
    %763 = vmatpush1.bf16.msra.mxu0 %v482
    %764 = vmatprep.subr.bf16.mxu0 0
    %765 = vmatpush1.bf16.msra.mxu0 0
    %766 = vmatprep.subr.bf16.mxu0 0
    %767 = vmatpush1.bf16.msra.mxu0 0
    %768 = vmatprep.subr.bf16.mxu0 0
    %769 = vmatpush1.bf16.msra.mxu0 0
    %770 = vmatprep.subr.bf16.mxu0 0
    %771 = vmatpush1.bf16.msra.mxu0 0
    %772 = vmatprep.subr.bf16.mxu0 0
    %773 = vmatpush1.bf16.msra.mxu0 0
    %774 = vmatprep.subr.bf16.mxu0 0
    %775 = vmatpush1.bf16.msra.mxu0 0
    %776 = vmatprep.subr.bf16.mxu0 0
    %777 = vmatpush1.bf16.msra.mxu0 0
    %778 = vmatprep.subr.bf16.mxu0 0
    %779 = vmatpush1.bf16.msra.mxu0 0
    %780 = vmatprep.mubr.bf16.mxu0 0
    %781 = vmatmul.mubr.bf16.gmra.mrb[0].mxu0 %v747
    %v782 = vpop.f32.mrb[0].mxu0
    %v783 = vadd.f32 0.0, %v782
    %v784 = vpop.f32.mrb[0].mxu0
    %v785 = vadd.f32 0.0, %v784
    %v786 = vpop.f32.mrb[0].mxu0
    %v787 = vpop.f32.mrb[0].mxu0
    %788 = vdwg.mxu0
    %789 = vmatprep.subr.bf16.mxu0 %v457
    %790 = vmatpush1.bf16.msra.mxu0 %v456
    %791 = vmatprep.subr.bf16.mxu0 %v461
    %792 = vmatpush1.bf16.msra.mxu0 %v460
    %793 = vmatprep.subr.bf16.mxu0 %v465
    %794 = vmatpush1.bf16.msra.mxu0 %v464
    %795 = vmatprep.subr.bf16.mxu0 %v469
    %796 = vmatpush1.bf16.msra.mxu0 %v468
    %797 = vmatprep.subr.bf16.mxu0 %v473
    %798 = vmatpush1.bf16.msra.mxu0 %v472
    %799 = vmatprep.subr.bf16.mxu0 %v477
    %800 = vmatpush1.bf16.msra.mxu0 %v476
    %801 = vmatprep.subr.bf16.mxu0 %v481
    %802 = vmatpush1.bf16.msra.mxu0 %v480
    %803 = vmatprep.subr.bf16.mxu0 %v485
    %804 = vmatpush1.bf16.msra.mxu0 %v484
    %805 = vmatprep.subr.bf16.mxu0 0
    %806 = vmatpush1.bf16.msra.mxu0 0
    %807 = vmatprep.subr.bf16.mxu0 0
    %808 = vmatpush1.bf16.msra.mxu0 0
    %809 = vmatprep.subr.bf16.mxu0 0
    %810 = vmatpush1.bf16.msra.mxu0 0
    %811 = vmatprep.subr.bf16.mxu0 0
    %812 = vmatpush1.bf16.msra.mxu0 0
    %813 = vmatprep.subr.bf16.mxu0 0
    %814 = vmatpush1.bf16.msra.mxu0 0
    %815 = vmatprep.subr.bf16.mxu0 0
    %816 = vmatpush1.bf16.msra.mxu0 0
    %817 = vmatprep.subr.bf16.mxu0 0
    %818 = vmatpush1.bf16.msra.mxu0 0
    %819 = vmatprep.subr.bf16.mxu0 0
    %820 = vmatpush1.bf16.msra.mxu0 0
    %821 = vmatprep.mubr.bf16.mxu0 0
    %822 = vmatmul.mubr.bf16.gmra.mrb[0].mxu0 %v747
    %v823 = vpop.f32.mrb[0].mxu0
    %v824 = vadd.f32 0.0, %v823
    %v825 = vpop.f32.mrb[0].mxu0
    %v826 = vadd.f32 0.0, %v825
    %v827 = vpop.f32.mrb[0].mxu0
    %v828 = vpop.f32.mrb[0].mxu0
    %829 = vdwg.mxu0
    %v830 = vadd.f32 %v743, %v783
    %v831 = vadd.f32 %v744, %v785
    %v832 = vadd.f32 %v745, %v824
    %v833 = vadd.f32 %v746, %v826
    %v834 = vxor.u32 %v830, 2147483648
    %v835 = vxor.u32 %v831, 2147483648
    %v836 = vxor.u32 %v832, 2147483648
    %v837 = vmul.f32 %v834, 1.442695
    %v838 = vpow.pop %v837
    %v839 = vmul.f32 %v835, 1.442695
    %v840 = vpow.pop %v839
    %v841 = vmul.f32 %v836, 1.442695
    %v842 = vpow.pop %v841
    %v843 = vadd.f32 %v838, 1.0
    %v844 = vadd.f32 %v840, 1.0
    %v845 = vadd.f32 %v842, 1.0
    %v846 = vrcp.pop %v843
    %v847 = vmul.f32 1.0, %v846
    %v848 = vrcp.pop %v844
    %v849 = vmul.f32 1.0, %v848
    %v850 = vrcp.pop %v845
    %v851 = vmul.f32 1.0, %v850
    %v852 = vtanh.pop %v833
    %v853 = vmul.f32 %v849, %v740
    %v854 = vmul.f32 %v847, %v852
    %v855 = vadd.f32 %v853, %v854
    %v856 = vtanh.pop %v855
    %v857 = vmul.f32 %v851, %v856
    %v858 = vld [vmem:[#allocation2 + $0x60] sm:$0xff]
    %v859 = vld [vmem:[#allocation2 + $0x68] sm:$0xff]
    %v860 = vld [vmem:[#allocation2 + $0x70] sm:$0xff]
    %v861 = vld [vmem:[#allocation2 + $0x78] sm:$0xff]
    %v862 = vpack.c.bf16 %v857, %v857
    %863 = vmatprep.subr.bf16.mxu0 %v455
    %864 = vmatpush1.bf16.msra.mxu0 %v454
    %865 = vmatprep.subr.bf16.mxu0 %v459
    %866 = vmatpush1.bf16.msra.mxu0 %v458
    %867 = vmatprep.subr.bf16.mxu0 %v463
    %868 = vmatpush1.bf16.msra.mxu0 %v462
    %869 = vmatprep.subr.bf16.mxu0 %v467
    %870 = vmatpush1.bf16.msra.mxu0 %v466
    %871 = vmatprep.subr.bf16.mxu0 %v471
    %872 = vmatpush1.bf16.msra.mxu0 %v470
    %873 = vmatprep.subr.bf16.mxu0 %v475
    %874 = vmatpush1.bf16.msra.mxu0 %v474
    %875 = vmatprep.subr.bf16.mxu0 %v479
    %876 = vmatpush1.bf16.msra.mxu0 %v478
    %877 = vmatprep.subr.bf16.mxu0 %v483
    %878 = vmatpush1.bf16.msra.mxu0 %v482
    %879 = vmatprep.subr.bf16.mxu0 0
    %880 = vmatpush1.bf16.msra.mxu0 0
    %881 = vmatprep.subr.bf16.mxu0 0
    %882 = vmatpush1.bf16.msra.mxu0 0
    %883 = vmatprep.subr.bf16.mxu0 0
    %884 = vmatpush1.bf16.msra.mxu0 0
    %885 = vmatprep.subr.bf16.mxu0 0
    %886 = vmatpush1.bf16.msra.mxu0 0
    %887 = vmatprep.subr.bf16.mxu0 0
    %888 = vmatpush1.bf16.msra.mxu0 0
    %889 = vmatprep.subr.bf16.mxu0 0
    %890 = vmatpush1.bf16.msra.mxu0 0
    %891 = vmatprep.subr.bf16.mxu0 0
    %892 = vmatpush1.bf16.msra.mxu0 0
    %893 = vmatprep.subr.bf16.mxu0 0
    %894 = vmatpush1.bf16.msra.mxu0 0
    %895 = vmatprep.mubr.bf16.mxu0 0
    %896 = vmatmul.mubr.bf16.gmra.mrb[0].mxu0 %v862
    %v897 = vpop.f32.mrb[0].mxu0
    %v898 = vadd.f32 0.0, %v897
    %v899 = vpop.f32.mrb[0].mxu0
    %v900 = vadd.f32 0.0, %v899
    %v901 = vpop.f32.mrb[0].mxu0
    %v902 = vpop.f32.mrb[0].mxu0
    %903 = vdwg.mxu0
    %904 = vmatprep.subr.bf16.mxu0 %v457
    %905 = vmatpush1.bf16.msra.mxu0 %v456
    %906 = vmatprep.subr.bf16.mxu0 %v461
    %907 = vmatpush1.bf16.msra.mxu0 %v460
    %908 = vmatprep.subr.bf16.mxu0 %v465
    %909 = vmatpush1.bf16.msra.mxu0 %v464
    %910 = vmatprep.subr.bf16.mxu0 %v469
    %911 = vmatpush1.bf16.msra.mxu0 %v468
    %912 = vmatprep.subr.bf16.mxu0 %v473
    %913 = vmatpush1.bf16.msra.mxu0 %v472
    %914 = vmatprep.subr.bf16.mxu0 %v477
    %915 = vmatpush1.bf16.msra.mxu0 %v476
    %916 = vmatprep.subr.bf16.mxu0 %v481
    %917 = vmatpush1.bf16.msra.mxu0 %v480
    %918 = vmatprep.subr.bf16.mxu0 %v485
    %919 = vmatpush1.bf16.msra.mxu0 %v484
    %920 = vmatprep.subr.bf16.mxu0 0
    %921 = vmatpush1.bf16.msra.mxu0 0
    %922 = vmatprep.subr.bf16.mxu0 0
    %923 = vmatpush1.bf16.msra.mxu0 0
    %924 = vmatprep.subr.bf16.mxu0 0
    %925 = vmatpush1.bf16.msra.mxu0 0
    %926 = vmatprep.subr.bf16.mxu0 0
    %927 = vmatpush1.bf16.msra.mxu0 0
    %928 = vmatprep.subr.bf16.mxu0 0
    %929 = vmatpush1.bf16.msra.mxu0 0
    %930 = vmatprep.subr.bf16.mxu0 0
    %931 = vmatpush1.bf16.msra.mxu0 0
    %932 = vmatprep.subr.bf16.mxu0 0
    %933 = vmatpush1.bf16.msra.mxu0 0
    %934 = vmatprep.subr.bf16.mxu0 0
    %935 = vmatpush1.bf16.msra.mxu0 0
    %936 = vmatprep.mubr.bf16.mxu0 0
    %937 = vmatmul.mubr.bf16.gmra.mrb[0].mxu0 %v862
    %v938 = vpop.f32.mrb[0].mxu0
    %v939 = vadd.f32 0.0, %v938
    %v940 = vpop.f32.mrb[0].mxu0
    %v941 = vadd.f32 0.0, %v940
    %v942 = vpop.f32.mrb[0].mxu0
    %v943 = vpop.f32.mrb[0].mxu0
    %944 = vdwg.mxu0
    %v945 = vadd.f32 %v858, %v898
    %v946 = vadd.f32 %v859, %v900
    %v947 = vadd.f32 %v860, %v939
    %v948 = vadd.f32 %v861, %v941
    %v949 = vxor.u32 %v945, 2147483648
    %v950 = vxor.u32 %v946, 2147483648
    %v951 = vxor.u32 %v947, 2147483648
    %v952 = vmul.f32 %v949, 1.442695
    %v953 = vpow.pop %v952
    %v954 = vmul.f32 %v950, 1.442695
    %v955 = vpow.pop %v954
    %v956 = vmul.f32 %v951, 1.442695
    %v957 = vpow.pop %v956
    %v958 = vadd.f32 %v953, 1.0
    %v959 = vadd.f32 %v955, 1.0
    %v960 = vadd.f32 %v957, 1.0
    %v961 = vrcp.pop %v958
    %v962 = vmul.f32 1.0, %v961
    %v963 = vrcp.pop %v959
    %v964 = vmul.f32 1.0, %v963
    %v965 = vrcp.pop %v960
    %v966 = vmul.f32 1.0, %v965
    %v967 = vtanh.pop %v948
    %v968 = vmul.f32 %v964, %v855
    %v969 = vmul.f32 %v962, %v967
    %v970 = vadd.f32 %v968, %v969
    %v971 = vtanh.pop %v970
    %v972 = vmul.f32 %v966, %v971
    %v973 = vld [vmem:[#allocation2 + $0x80] sm:$0xff]
    %v974 = vld [vmem:[#allocation2 + $0x88] sm:$0xff]
    %v975 = vld [vmem:[#allocation2 + $0x90] sm:$0xff]
    %v976 = vld [vmem:[#allocation2 + $0x98] sm:$0xff]
    %v977 = vpack.c.bf16 %v972, %v972
    %978 = vmatprep.subr.bf16.mxu0 %v455
    %979 = vmatpush1.bf16.msra.mxu0 %v454
    %980 = vmatprep.subr.bf16.mxu0 %v459
    %981 = vmatpush1.bf16.msra.mxu0 %v458
    %982 = vmatprep.subr.bf16.mxu0 %v463
    %983 = vmatpush1.bf16.msra.mxu0 %v462
    %984 = vmatprep.subr.bf16.mxu0 %v467
    %985 = vmatpush1.bf16.msra.mxu0 %v466
    %986 = vmatprep.subr.bf16.mxu0 %v471
    %987 = vmatpush1.bf16.msra.mxu0 %v470
    %988 = vmatprep.subr.bf16.mxu0 %v475
    %989 = vmatpush1.bf16.msra.mxu0 %v474
    %990 = vmatprep.subr.bf16.mxu0 %v479
    %991 = vmatpush1.bf16.msra.mxu0 %v478
    %992 = vmatprep.subr.bf16.mxu0 %v483
    %993 = vmatpush1.bf16.msra.mxu0 %v482
    %994 = vmatprep.subr.bf16.mxu0 0
    %995 = vmatpush1.bf16.msra.mxu0 0
    %996 = vmatprep.subr.bf16.mxu0 0
    %997 = vmatpush1.bf16.msra.mxu0 0
    %998 = vmatprep.subr.bf16.mxu0 0
    %999 = vmatpush1.bf16.msra.mxu0 0
    %1000 = vmatprep.subr.bf16.mxu0 0
    %1001 = vmatpush1.bf16.msra.mxu0 0
    %1002 = vmatprep.subr.bf16.mxu0 0
    %1003 = vmatpush1.bf16.msra.mxu0 0
    %1004 = vmatprep.subr.bf16.mxu0 0
    %1005 = vmatpush1.bf16.msra.mxu0 0
    %1006 = vmatprep.subr.bf16.mxu0 0
    %1007 = vmatpush1.bf16.msra.mxu0 0
    %1008 = vmatprep.subr.bf16.mxu0 0
    %1009 = vmatpush1.bf16.msra.mxu0 0
    %1010 = vmatprep.mubr.bf16.mxu0 0
    %1011 = vmatmul.mubr.bf16.gmra.mrb[0].mxu0 %v977
    %v1012 = vpop.f32.mrb[0].mxu0
    %v1013 = vadd.f32 0.0, %v1012
    %v1014 = vpop.f32.mrb[0].mxu0
    %v1015 = vadd.f32 0.0, %v1014
    %v1016 = vpop.f32.mrb[0].mxu0
    %v1017 = vpop.f32.mrb[0].mxu0
    %1018 = vdwg.mxu0
    %1019 = vmatprep.subr.bf16.mxu0 %v457
    %1020 = vmatpush1.bf16.msra.mxu0 %v456
    %1021 = vmatprep.subr.bf16.mxu0 %v461
    %1022 = vmatpush1.bf16.msra.mxu0 %v460
    %1023 = vmatprep.subr.bf16.mxu0 %v465
    %1024 = vmatpush1.bf16.msra.mxu0 %v464
    %1025 = vmatprep.subr.bf16.mxu0 %v469
    %1026 = vmatpush1.bf16.msra.mxu0 %v468
    %1027 = vmatprep.subr.bf16.mxu0 %v473
    %1028 = vmatpush1.bf16.msra.mxu0 %v472
    %1029 = vmatprep.subr.bf16.mxu0 %v477
    %1030 = vmatpush1.bf16.msra.mxu0 %v476
    %1031 = vmatprep.subr.bf16.mxu0 %v481
    %1032 = vmatpush1.bf16.msra.mxu0 %v480
    %1033 = vmatprep.subr.bf16.mxu0 %v485
    %1034 = vmatpush1.bf16.msra.mxu0 %v484
    %1035 = vmatprep.subr.bf16.mxu0 0
    %1036 = vmatpush1.bf16.msra.mxu0 0
    %1037 = vmatprep.subr.bf16.mxu0 0
    %1038 = vmatpush1.bf16.msra.mxu0 0
    %1039 = vmatprep.subr.bf16.mxu0 0
    %1040 = vmatpush1.bf16.msra.mxu0 0
    %1041 = vmatprep.subr.bf16.mxu0 0
    %1042 = vmatpush1.bf16.msra.mxu0 0
    %1043 = vmatprep.subr.bf16.mxu0 0
    %1044 = vmatpush1.bf16.msra.mxu0 0
    %1045 = vmatprep.subr.bf16.mxu0 0
    %1046 = vmatpush1.bf16.msra.mxu0 0
    %1047 = vmatprep.subr.bf16.mxu0 0
    %1048 = vmatpush1.bf16.msra.mxu0 0
    %1049 = vmatprep.subr.bf16.mxu0 0
    %1050 = vmatpush1.bf16.msra.mxu0 0
    %1051 = vmatprep.mubr.bf16.mxu0 0
    %1052 = vmatmul.mubr.bf16.gmra.mrb[0].mxu0 %v977
    %v1053 = vpop.f32.mrb[0].mxu0
    %v1054 = vadd.f32 0.0, %v1053
    %v1055 = vpop.f32.mrb[0].mxu0
    %v1056 = vadd.f32 0.0, %v1055
    %v1057 = vpop.f32.mrb[0].mxu0
    %v1058 = vpop.f32.mrb[0].mxu0
    %1059 = vdwg.mxu0
    %v1060 = vadd.f32 %v973, %v1013
    %v1061 = vadd.f32 %v974, %v1015
    %v1062 = vadd.f32 %v975, %v1054
    %v1063 = vadd.f32 %v976, %v1056
    %v1064 = vxor.u32 %v1060, 2147483648
    %v1065 = vxor.u32 %v1061, 2147483648
    %v1066 = vxor.u32 %v1062, 2147483648
    %v1067 = vmul.f32 %v1064, 1.442695
    %v1068 = vpow.pop %v1067
    %v1069 = vmul.f32 %v1065, 1.442695
    %v1070 = vpow.pop %v1069
    %v1071 = vmul.f32 %v1066, 1.442695
    %v1072 = vpow.pop %v1071
    %v1073 = vadd.f32 %v1068, 1.0
    %v1074 = vadd.f32 %v1070, 1.0
    %v1075 = vadd.f32 %v1072, 1.0
    %v1076 = vrcp.pop %v1073
    %v1077 = vmul.f32 1.0, %v1076
    %v1078 = vrcp.pop %v1074
    %v1079 = vmul.f32 1.0, %v1078
    %v1080 = vrcp.pop %v1075
    %v1081 = vmul.f32 1.0, %v1080
    %v1082 = vtanh.pop %v1063
    %v1083 = vmul.f32 %v1079, %v970
    %v1084 = vmul.f32 %v1077, %v1082
    %v1085 = vadd.f32 %v1083, %v1084
    %v1086 = vtanh.pop %v1085
    %v1087 = vmul.f32 %v1081, %v1086
    %v1088 = vld [vmem:[#allocation2 + $0xa0] sm:$0xff]
    %v1089 = vld [vmem:[#allocation2 + $0xa8] sm:$0xff]
    %v1090 = vld [vmem:[#allocation2 + $0xb0] sm:$0xff]
    %v1091 = vld [vmem:[#allocation2 + $0xb8] sm:$0xff]
    %v1092 = vpack.c.bf16 %v1087, %v1087
    %1093 = vmatprep.subr.bf16.mxu0 %v455
    %1094 = vmatpush1.bf16.msra.mxu0 %v454
    %1095 = vmatprep.subr.bf16.mxu0 %v459
    %1096 = vmatpush1.bf16.msra.mxu0 %v458
    %1097 = vmatprep.subr.bf16.mxu0 %v463
    %1098 = vmatpush1.bf16.msra.mxu0 %v462
    %1099 = vmatprep.subr.bf16.mxu0 %v467
    %1100 = vmatpush1.bf16.msra.mxu0 %v466
    %1101 = vmatprep.subr.bf16.mxu0 %v471
    %1102 = vmatpush1.bf16.msra.mxu0 %v470
    %1103 = vmatprep.subr.bf16.mxu0 %v475
    %1104 = vmatpush1.bf16.msra.mxu0 %v474
    %1105 = vmatprep.subr.bf16.mxu0 %v479
    %1106 = vmatpush1.bf16.msra.mxu0 %v478
    %1107 = vmatprep.subr.bf16.mxu0 %v483
    %1108 = vmatpush1.bf16.msra.mxu0 %v482
    %1109 = vmatprep.subr.bf16.mxu0 0
    %1110 = vmatpush1.bf16.msra.mxu0 0
    %1111 = vmatprep.subr.bf16.mxu0 0
    %1112 = vmatpush1.bf16.msra.mxu0 0
    %1113 = vmatprep.subr.bf16.mxu0 0
    %1114 = vmatpush1.bf16.msra.mxu0 0
    %1115 = vmatprep.subr.bf16.mxu0 0
    %1116 = vmatpush1.bf16.msra.mxu0 0
    %1117 = vmatprep.subr.bf16.mxu0 0
    %1118 = vmatpush1.bf16.msra.mxu0 0
    %1119 = vmatprep.subr.bf16.mxu0 0
    %1120 = vmatpush1.bf16.msra.mxu0 0
    %1121 = vmatprep.subr.bf16.mxu0 0
    %1122 = vmatpush1.bf16.msra.mxu0 0
    %1123 = vmatprep.subr.bf16.mxu0 0
    %1124 = vmatpush1.bf16.msra.mxu0 0
    %1125 = vmatprep.mubr.bf16.mxu0 0
    %1126 = vmatmul.mubr.bf16.gmra.mrb[0].mxu0 %v1092
    %v1127 = vpop.f32.mrb[0].mxu0
    %v1128 = vadd.f32 0.0, %v1127
    %v1129 = vpop.f32.mrb[0].mxu0
    %v1130 = vadd.f32 0.0, %v1129
    %v1131 = vpop.f32.mrb[0].mxu0
    %v1132 = vpop.f32.mrb[0].mxu0
    %1133 = vdwg.mxu0
    %1134 = vmatprep.subr.bf16.mxu0 %v457
    %1135 = vmatpush1.bf16.msra.mxu0 %v456
    %1136 = vmatprep.subr.bf16.mxu0 %v461
    %1137 = vmatpush1.bf16.msra.mxu0 %v460
    %1138 = vmatprep.subr.bf16.mxu0 %v465
    %1139 = vmatpush1.bf16.msra.mxu0 %v464
    %1140 = vmatprep.subr.bf16.mxu0 %v469
    %1141 = vmatpush1.bf16.msra.mxu0 %v468
    %1142 = vmatprep.subr.bf16.mxu0 %v473
    %1143 = vmatpush1.bf16.msra.mxu0 %v472
    %1144 = vmatprep.subr.bf16.mxu0 %v477
    %1145 = vmatpush1.bf16.msra.mxu0 %v476
    %1146 = vmatprep.subr.bf16.mxu0 %v481
    %1147 = vmatpush1.bf16.msra.mxu0 %v480
    %1148 = vmatprep.subr.bf16.mxu0 %v485
    %1149 = vmatpush1.bf16.msra.mxu0 %v484
    %1150 = vmatprep.subr.bf16.mxu0 0
    %1151 = vmatpush1.bf16.msra.mxu0 0
    %1152 = vmatprep.subr.bf16.mxu0 0
    %1153 = vmatpush1.bf16.msra.mxu0 0
    %1154 = vmatprep.subr.bf16.mxu0 0
    %1155 = vmatpush1.bf16.msra.mxu0 0
    %1156 = vmatprep.subr.bf16.mxu0 0
    %1157 = vmatpush1.bf16.msra.mxu0 0
    %1158 = vmatprep.subr.bf16.mxu0 0
    %1159 = vmatpush1.bf16.msra.mxu0 0
    %1160 = vmatprep.subr.bf16.mxu0 0
    %1161 = vmatpush1.bf16.msra.mxu0 0
    %1162 = vmatprep.subr.bf16.mxu0 0
    %1163 = vmatpush1.bf16.msra.mxu0 0
    %1164 = vmatprep.subr.bf16.mxu0 0
    %1165 = vmatpush1.bf16.msra.mxu0 0
    %1166 = vmatprep.mubr.bf16.mxu0 0
    %1167 = vmatmul.mubr.bf16.gmra.mrb[0].mxu0 %v1092
    %v1168 = vpop.f32.mrb[0].mxu0
    %v1169 = vadd.f32 0.0, %v1168
    %v1170 = vpop.f32.mrb[0].mxu0
    %v1171 = vadd.f32 0.0, %v1170
    %v1172 = vpop.f32.mrb[0].mxu0
    %v1173 = vpop.f32.mrb[0].mxu0
    %1174 = vdwg.mxu0
    %v1175 = vadd.f32 %v1088, %v1128
    %v1176 = vadd.f32 %v1089, %v1130
    %v1177 = vadd.f32 %v1090, %v1169
    %v1178 = vadd.f32 %v1091, %v1171
    %v1179 = vxor.u32 %v1175, 2147483648
    %v1180 = vxor.u32 %v1176, 2147483648
    %v1181 = vxor.u32 %v1177, 2147483648
    %v1182 = vmul.f32 %v1179, 1.442695
    %v1183 = vpow.pop %v1182
    %v1184 = vmul.f32 %v1180, 1.442695
    %v1185 = vpow.pop %v1184
    %v1186 = vmul.f32 %v1181, 1.442695
    %v1187 = vpow.pop %v1186
    %v1188 = vadd.f32 %v1183, 1.0
    %v1189 = vadd.f32 %v1185, 1.0
    %v1190 = vadd.f32 %v1187, 1.0
    %v1191 = vrcp.pop %v1188
    %v1192 = vmul.f32 1.0, %v1191
    %v1193 = vrcp.pop %v1189
    %v1194 = vmul.f32 1.0, %v1193
    %v1195 = vrcp.pop %v1190
    %v1196 = vmul.f32 1.0, %v1195
    %v1197 = vtanh.pop %v1178
    %v1198 = vmul.f32 %v1194, %v1085
    %v1199 = vmul.f32 %v1192, %v1197
    %v1200 = vadd.f32 %v1198, %v1199
    %v1201 = vtanh.pop %v1200
    %v1202 = vmul.f32 %v1196, %v1201
    %v1203 = vld [vmem:[#allocation2 + $0xc0] sm:$0xff]
    %v1204 = vld [vmem:[#allocation2 + $0xc8] sm:$0xff]
    %v1205 = vld [vmem:[#allocation2 + $0xd0] sm:$0xff]
    %v1206 = vld [vmem:[#allocation2 + $0xd8] sm:$0xff]
    %v1207 = vpack.c.bf16 %v1202, %v1202
    %1208 = vmatprep.subr.bf16.mxu0 %v455
    %1209 = vmatpush1.bf16.msra.mxu0 %v454
    %1210 = vmatprep.subr.bf16.mxu0 %v459
    %1211 = vmatpush1.bf16.msra.mxu0 %v458
    %1212 = vmatprep.subr.bf16.mxu0 %v463
    %1213 = vmatpush1.bf16.msra.mxu0 %v462
    %1214 = vmatprep.subr.bf16.mxu0 %v467
    %1215 = vmatpush1.bf16.msra.mxu0 %v466
    %1216 = vmatprep.subr.bf16.mxu0 %v471
    %1217 = vmatpush1.bf16.msra.mxu0 %v470
    %1218 = vmatprep.subr.bf16.mxu0 %v475
    %1219 = vmatpush1.bf16.msra.mxu0 %v474
    %1220 = vmatprep.subr.bf16.mxu0 %v479
    %1221 = vmatpush1.bf16.msra.mxu0 %v478
    %1222 = vmatprep.subr.bf16.mxu0 %v483
    %1223 = vmatpush1.bf16.msra.mxu0 %v482
    %1224 = vmatprep.subr.bf16.mxu0 0
    %1225 = vmatpush1.bf16.msra.mxu0 0
    %1226 = vmatprep.subr.bf16.mxu0 0
    %1227 = vmatpush1.bf16.msra.mxu0 0
    %1228 = vmatprep.subr.bf16.mxu0 0
    %1229 = vmatpush1.bf16.msra.mxu0 0
    %1230 = vmatprep.subr.bf16.mxu0 0
    %1231 = vmatpush1.bf16.msra.mxu0 0
    %1232 = vmatprep.subr.bf16.mxu0 0
    %1233 = vmatpush1.bf16.msra.mxu0 0
    %1234 = vmatprep.subr.bf16.mxu0 0
    %1235 = vmatpush1.bf16.msra.mxu0 0
    %1236 = vmatprep.subr.bf16.mxu0 0
    %1237 = vmatpush1.bf16.msra.mxu0 0
    %1238 = vmatprep.subr.bf16.mxu0 0
    %1239 = vmatpush1.bf16.msra.mxu0 0
    %1240 = vmatprep.mubr.bf16.mxu0 0
    %1241 = vmatmul.mubr.bf16.gmra.mrb[0].mxu0 %v1207
    %v1242 = vpop.f32.mrb[0].mxu0
    %v1243 = vadd.f32 0.0, %v1242
    %v1244 = vpop.f32.mrb[0].mxu0
    %v1245 = vadd.f32 0.0, %v1244
    %v1246 = vpop.f32.mrb[0].mxu0
    %v1247 = vpop.f32.mrb[0].mxu0
    %1248 = vdwg.mxu0
    %1249 = vmatprep.subr.bf16.mxu0 %v457
    %1250 = vmatpush1.bf16.msra.mxu0 %v456
    %1251 = vmatprep.subr.bf16.mxu0 %v461
    %1252 = vmatpush1.bf16.msra.mxu0 %v460
    %1253 = vmatprep.subr.bf16.mxu0 %v465
    %1254 = vmatpush1.bf16.msra.mxu0 %v464
    %1255 = vmatprep.subr.bf16.mxu0 %v469
    %1256 = vmatpush1.bf16.msra.mxu0 %v468
    %1257 = vmatprep.subr.bf16.mxu0 %v473
    %1258 = vmatpush1.bf16.msra.mxu0 %v472
    %1259 = vmatprep.subr.bf16.mxu0 %v477
    %1260 = vmatpush1.bf16.msra.mxu0 %v476
    %1261 = vmatprep.subr.bf16.mxu0 %v481
    %1262 = vmatpush1.bf16.msra.mxu0 %v480
    %1263 = vmatprep.subr.bf16.mxu0 %v485
    %1264 = vmatpush1.bf16.msra.mxu0 %v484
    %1265 = vmatprep.subr.bf16.mxu0 0
    %1266 = vmatpush1.bf16.msra.mxu0 0
    %1267 = vmatprep.subr.bf16.mxu0 0
    %1268 = vmatpush1.bf16.msra.mxu0 0
    %1269 = vmatprep.subr.bf16.mxu0 0
    %1270 = vmatpush1.bf16.msra.mxu0 0
    %1271 = vmatprep.subr.bf16.mxu0 0
    %1272 = vmatpush1.bf16.msra.mxu0 0
    %1273 = vmatprep.subr.bf16.mxu0 0
    %1274 = vmatpush1.bf16.msra.mxu0 0
    %1275 = vmatprep.subr.bf16.mxu0 0
    %1276 = vmatpush1.bf16.msra.mxu0 0
    %1277 = vmatprep.subr.bf16.mxu0 0
    %1278 = vmatpush1.bf16.msra.mxu0 0
    %1279 = vmatprep.subr.bf16.mxu0 0
    %1280 = vmatpush1.bf16.msra.mxu0 0
    %1281 = vmatprep.mubr.bf16.mxu0 0
    %1282 = vmatmul.mubr.bf16.gmra.mrb[0].mxu0 %v1207
    %v1283 = vpop.f32.mrb[0].mxu0
    %v1284 = vadd.f32 0.0, %v1283
    %v1285 = vpop.f32.mrb[0].mxu0
    %v1286 = vadd.f32 0.0, %v1285
    %v1287 = vpop.f32.mrb[0].mxu0
    %v1288 = vpop.f32.mrb[0].mxu0
    %1289 = vdwg.mxu0
    %v1290 = vadd.f32 %v1203, %v1243
    %v1291 = vadd.f32 %v1204, %v1245
    %v1292 = vadd.f32 %v1205, %v1284
    %v1293 = vadd.f32 %v1206, %v1286
    %v1294 = vxor.u32 %v1290, 2147483648
    %v1295 = vxor.u32 %v1291, 2147483648
    %v1296 = vxor.u32 %v1292, 2147483648
    %v1297 = vmul.f32 %v1294, 1.442695
    %v1298 = vpow.pop %v1297
    %v1299 = vmul.f32 %v1295, 1.442695
    %v1300 = vpow.pop %v1299
    %v1301 = vmul.f32 %v1296, 1.442695
    %v1302 = vpow.pop %v1301
    %v1303 = vadd.f32 %v1298, 1.0
    %v1304 = vadd.f32 %v1300, 1.0
    %v1305 = vadd.f32 %v1302, 1.0
    %v1306 = vrcp.pop %v1303
    %v1307 = vmul.f32 1.0, %v1306
    %v1308 = vrcp.pop %v1304
    %v1309 = vmul.f32 1.0, %v1308
    %v1310 = vrcp.pop %v1305
    %v1311 = vmul.f32 1.0, %v1310
    %v1312 = vtanh.pop %v1293
    %v1313 = vmul.f32 %v1309, %v1200
    %v1314 = vmul.f32 %v1307, %v1312
    %v1315 = vadd.f32 %v1313, %v1314
    %v1316 = vtanh.pop %v1315
    %v1317 = vmul.f32 %v1311, %v1316
    %v1318 = vld [vmem:[#allocation2 + $0xe0] sm:$0xff]
    %v1319 = vld [vmem:[#allocation2 + $0xe8] sm:$0xff]
    %v1320 = vld [vmem:[#allocation2 + $0xf0] sm:$0xff]
    %v1321 = vld [vmem:[#allocation2 + $0xf8] sm:$0xff]
    %v1322 = vpack.c.bf16 %v1317, %v1317
    %1323 = vmatprep.subr.bf16.mxu0 %v455
    %1324 = vmatpush1.bf16.msra.mxu0 %v454
    %1325 = vmatprep.subr.bf16.mxu0 %v459
    %1326 = vmatpush1.bf16.msra.mxu0 %v458
    %1327 = vmatprep.subr.bf16.mxu0 %v463
    %1328 = vmatpush1.bf16.msra.mxu0 %v462
    %1329 = vmatprep.subr.bf16.mxu0 %v467
    %1330 = vmatpush1.bf16.msra.mxu0 %v466
    %1331 = vmatprep.subr.bf16.mxu0 %v471
    %1332 = vmatpush1.bf16.msra.mxu0 %v470
    %1333 = vmatprep.subr.bf16.mxu0 %v475
    %1334 = vmatpush1.bf16.msra.mxu0 %v474
    %1335 = vmatprep.subr.bf16.mxu0 %v479
    %1336 = vmatpush1.bf16.msra.mxu0 %v478
    %1337 = vmatprep.subr.bf16.mxu0 %v483
    %1338 = vmatpush1.bf16.msra.mxu0 %v482
    %1339 = vmatprep.subr.bf16.mxu0 0
    %1340 = vmatpush1.bf16.msra.mxu0 0
    %1341 = vmatprep.subr.bf16.mxu0 0
    %1342 = vmatpush1.bf16.msra.mxu0 0
    %1343 = vmatprep.subr.bf16.mxu0 0
    %1344 = vmatpush1.bf16.msra.mxu0 0
    %1345 = vmatprep.subr.bf16.mxu0 0
    %1346 = vmatpush1.bf16.msra.mxu0 0
    %1347 = vmatprep.subr.bf16.mxu0 0
    %1348 = vmatpush1.bf16.msra.mxu0 0
    %1349 = vmatprep.subr.bf16.mxu0 0
    %1350 = vmatpush1.bf16.msra.mxu0 0
    %1351 = vmatprep.subr.bf16.mxu0 0
    %1352 = vmatpush1.bf16.msra.mxu0 0
    %1353 = vmatprep.subr.bf16.mxu0 0
    %1354 = vmatpush1.bf16.msra.mxu0 0
    %1355 = vmatprep.mubr.bf16.mxu0 0
    %1356 = vmatmul.mubr.bf16.gmra.mrb[0].mxu0 %v1322
    %v1357 = vpop.f32.mrb[0].mxu0
    %v1358 = vadd.f32 0.0, %v1357
    %v1359 = vpop.f32.mrb[0].mxu0
    %v1360 = vadd.f32 0.0, %v1359
    %v1361 = vpop.f32.mrb[0].mxu0
    %v1362 = vpop.f32.mrb[0].mxu0
    %1363 = vdwg.mxu0
    %1364 = vmatprep.subr.bf16.mxu0 %v457
    %1365 = vmatpush1.bf16.msra.mxu0 %v456
    %1366 = vmatprep.subr.bf16.mxu0 %v461
    %1367 = vmatpush1.bf16.msra.mxu0 %v460
    %1368 = vmatprep.subr.bf16.mxu0 %v465
    %1369 = vmatpush1.bf16.msra.mxu0 %v464
    %1370 = vmatprep.subr.bf16.mxu0 %v469
    %1371 = vmatpush1.bf16.msra.mxu0 %v468
    %1372 = vmatprep.subr.bf16.mxu0 %v473
    %1373 = vmatpush1.bf16.msra.mxu0 %v472
    %1374 = vmatprep.subr.bf16.mxu0 %v477
    %1375 = vmatpush1.bf16.msra.mxu0 %v476
    %1376 = vmatprep.subr.bf16.mxu0 %v481
    %1377 = vmatpush1.bf16.msra.mxu0 %v480
    %1378 = vmatprep.subr.bf16.mxu0 %v485
    %1379 = vmatpush1.bf16.msra.mxu0 %v484
    %1380 = vmatprep.subr.bf16.mxu0 0
    %1381 = vmatpush1.bf16.msra.mxu0 0
    %1382 = vmatprep.subr.bf16.mxu0 0
    %1383 = vmatpush1.bf16.msra.mxu0 0
    %1384 = vmatprep.subr.bf16.mxu0 0
    %1385 = vmatpush1.bf16.msra.mxu0 0
    %1386 = vmatprep.subr.bf16.mxu0 0
    %1387 = vmatpush1.bf16.msra.mxu0 0
    %1388 = vmatprep.subr.bf16.mxu0 0
    %1389 = vmatpush1.bf16.msra.mxu0 0
    %1390 = vmatprep.subr.bf16.mxu0 0
    %1391 = vmatpush1.bf16.msra.mxu0 0
    %1392 = vmatprep.subr.bf16.mxu0 0
    %1393 = vmatpush1.bf16.msra.mxu0 0
    %1394 = vmatprep.subr.bf16.mxu0 0
    %1395 = vmatpush1.bf16.msra.mxu0 0
    %1396 = vmatprep.mubr.bf16.mxu0 0
    %1397 = vmatmul.mubr.bf16.gmra.mrb[0].mxu0 %v1322
    %v1398 = vpop.f32.mrb[0].mxu0
    %v1399 = vadd.f32 0.0, %v1398
    %v1400 = vpop.f32.mrb[0].mxu0
    %v1401 = vadd.f32 0.0, %v1400
    %v1402 = vpop.f32.mrb[0].mxu0
    %v1403 = vpop.f32.mrb[0].mxu0
    %1404 = vdwg.mxu0
    %v1405 = vadd.f32 %v1318, %v1358
    %v1406 = vadd.f32 %v1319, %v1360
    %v1407 = vadd.f32 %v1320, %v1399
    %v1408 = vadd.f32 %v1321, %v1401
    %v1409 = vxor.u32 %v1405, 2147483648
    %v1410 = vxor.u32 %v1406, 2147483648
    %v1411 = vxor.u32 %v1407, 2147483648
    %v1412 = vmul.f32 %v1409, 1.442695
    %v1413 = vpow.pop %v1412
    %v1414 = vmul.f32 %v1410, 1.442695
    %v1415 = vpow.pop %v1414
    %v1416 = vmul.f32 %v1411, 1.442695
    %v1417 = vpow.pop %v1416
    %v1418 = vadd.f32 %v1413, 1.0
    %v1419 = vadd.f32 %v1415, 1.0
    %v1420 = vadd.f32 %v1417, 1.0
    %v1421 = vrcp.pop %v1418
    %v1422 = vmul.f32 1.0, %v1421
    %v1423 = vrcp.pop %v1419
    %v1424 = vmul.f32 1.0, %v1423
    %v1425 = vrcp.pop %v1420
    %v1426 = vmul.f32 1.0, %v1425
    %v1427 = vtanh.pop %v1408
    %v1428 = vmul.f32 %v1424, %v1315
    %v1429 = vmul.f32 %v1422, %v1427
    %v1430 = vadd.f32 %v1428, %v1429
    %v1431 = vtanh.pop %v1430
    %v1432 = vmul.f32 %v1426, %v1431
    %1433 = vst [vmem:[%s7] sm:$0xff] %v1432
    %1434 = vst [vmem:[%s8] sm:$0xff] %v1430
    %v1435 = vpack.c.bf16 %v1432, %v1432
    %v1436 = vld [vmem:[%s4] sm:$0xf]
    %v1437 = vld [vmem:[%s4 + $0x4] sm:$0xf]
    %v1438 = vld [vmem:[%s4 + $0x8] sm:$0xf]
    %v1439 = vld [vmem:[%s4 + $0xc] sm:$0xf]
    %v1440 = vld [vmem:[%s4 + $0x10] sm:$0xf]
    %v1441 = vld [vmem:[%s4 + $0x14] sm:$0xf]
    %v1442 = vld [vmem:[%s4 + $0x18] sm:$0xf]
    %v1443 = vld [vmem:[%s4 + $0x1c] sm:$0xf]
    %v1444 = vld [vmem:[%s4 + $0x20] sm:$0xf]
    %v1445 = vld [vmem:[%s4 + $0x24] sm:$0xf]
    %v1446 = vld [vmem:[%s4 + $0x28] sm:$0xf]
    %v1447 = vld [vmem:[%s4 + $0x2c] sm:$0xf]
    %v1448 = vld [vmem:[%s4 + $0x30] sm:$0xf]
    %v1449 = vld [vmem:[%s4 + $0x34] sm:$0xf]
    %v1450 = vld [vmem:[%s4 + $0x38] sm:$0xf]
    %v1451 = vld [vmem:[%s4 + $0x3c] sm:$0xf]
    %v1452 = vld [vmem:[%s5] sm:$0x1]
    %v1454 = vlaneseq
    %v1455 = vshrl.u32 %v1454, 7
    %v1456 = vsub.s32 0, %v1455
    %v1457 = vrot.slane %v1452, %v1456
    %v1475 = vunpack.c.l.b16 %v1436
    %v1476 = vunpack.c.l.b16 %v1437
    %v1477 = vunpack.c.l.b16 %v1438
    %v1478 = vunpack.c.l.b16 %v1439
    %v1479 = vunpack.c.l.b16 %v1440
    %v1480 = vunpack.c.l.b16 %v1441
    %v1481 = vunpack.c.l.b16 %v1442
    %v1482 = vunpack.c.l.b16 %v1443
    %v1483 = vunpack.c.l.b16 %v1444
    %v1484 = vunpack.c.l.b16 %v1445
    %v1485 = vunpack.c.l.b16 %v1446
    %v1486 = vunpack.c.l.b16 %v1447
    %v1487 = vunpack.c.l.b16 %v1448
    %v1488 = vunpack.c.l.b16 %v1449
    %v1489 = vunpack.c.l.b16 %v1450
    %v1490 = vunpack.c.l.b16 %v1451
    %v1491 = vpack.c.b16 %v1476, %v1475
    %v1492 = vpack.c.b16 %v1478, %v1477
    %v1493 = vpack.c.b16 %v1480, %v1479
    %v1494 = vpack.c.b16 %v1482, %v1481
    %v1495 = vpack.c.b16 %v1484, %v1483
    %v1496 = vpack.c.b16 %v1486, %v1485
    %v1497 = vpack.c.b16 %v1488, %v1487
    %v1498 = vpack.c.b16 %v1490, %v1489
    %1507 = vmatprep.subr.bf16.mxu0 0
    %1508 = vmatpush1.bf16.msra.mxu0 %v1491
    %1509 = vmatprep.subr.bf16.mxu0 0
    %1510 = vmatpush1.bf16.msra.mxu0 %v1492
    %1511 = vmatprep.subr.bf16.mxu0 0
    %1512 = vmatpush1.bf16.msra.mxu0 %v1493
    %1513 = vmatprep.subr.bf16.mxu0 0
    %1514 = vmatpush1.bf16.msra.mxu0 %v1494
    %1515 = vmatprep.subr.bf16.mxu0 0
    %1516 = vmatpush1.bf16.msra.mxu0 %v1495
    %1517 = vmatprep.subr.bf16.mxu0 0
    %1518 = vmatpush1.bf16.msra.mxu0 %v1496
    %1519 = vmatprep.subr.bf16.mxu0 0
    %1520 = vmatpush1.bf16.msra.mxu0 %v1497
    %1521 = vmatprep.subr.bf16.mxu0 0
    %1522 = vmatpush1.bf16.msra.mxu0 %v1498
    %1523 = vmatprep.subr.bf16.mxu0 0
    %1524 = vmatpush1.bf16.msra.mxu0 0
    %1525 = vmatprep.subr.bf16.mxu0 0
    %1526 = vmatpush1.bf16.msra.mxu0 0
    %1527 = vmatprep.subr.bf16.mxu0 0
    %1528 = vmatpush1.bf16.msra.mxu0 0
    %1529 = vmatprep.subr.bf16.mxu0 0
    %1530 = vmatpush1.bf16.msra.mxu0 0
    %1531 = vmatprep.subr.bf16.mxu0 0
    %1532 = vmatpush1.bf16.msra.mxu0 0
    %1533 = vmatprep.subr.bf16.mxu0 0
    %1534 = vmatpush1.bf16.msra.mxu0 0
    %1535 = vmatprep.subr.bf16.mxu0 0
    %1536 = vmatpush1.bf16.msra.mxu0 0
    %1537 = vmatprep.subr.bf16.mxu0 0
    %1538 = vmatpush1.bf16.msra.mxu0 0
    %1539 = vmatprep.mubr.bf16.mxu0 0
    %1540 = vmatmul.mubr.bf16.gmra.mrb[0].mxu0 %v1435
    %v1541 = vpop.f32.mrb[0].mxu0
    %v1542 = vadd.f32 %v1457, %v1541
    %v1543 = vpop.f32.mrb[0].mxu0
    %v1544 = vpop.f32.mrb[0].mxu0
    %v1545 = vpop.f32.mrb[0].mxu0
    %1546 = vdwg.mxu0
    %1547 = vst [vmem:[%s6] sm:$0xff] %v1542
    // Predicated region
    $region34: #{lstm_model_forward.1} parent=1 // pred_check
      _
    $region35: #{lstm_model_forward.1} parent=1 // pred_check_branch
      %1549 = sbr.rel (0) target = $region37
    $region36: #{lstm_model_forward.1} parent=1 // pred_region
      _
    $region37: #{lstm_model_forward.1} parent=1 // pred_fallthru
      _
    // Predicated region
    $region38: #{lstm_model_forward.1} parent=1 // pred_check
      _
    $region39: #{lstm_model_forward.1} parent=1 // pred_check_branch
      %1551 = sbr.rel (0) target = $region41
    $region40: #{lstm_model_forward.1} parent=1 // pred_region
      _
    $region41: #{lstm_model_forward.1} parent=1 // pred_fallthru
      _
    // Predicated region
    $region42: #{lstm_model_forward.1} parent=1 // pred_check
      _
    $region43: #{lstm_model_forward.1} parent=1 // pred_check_branch
      %1553 = sbr.rel (0) target = $region45
    $region44: #{lstm_model_forward.1} parent=1 // pred_region
      _
    $region45: #{lstm_model_forward.1} parent=1 // pred_fallthru
      _
    // Predicated region
    $region46: #{lstm_model_forward.1} parent=1 // pred_check
      _
    $region47: #{lstm_model_forward.1} parent=1 // pred_check_branch
      %1555 = sbr.rel (0) target = $region49
    $region48: #{lstm_model_forward.1} parent=1 // pred_region
      _
    $region49: #{lstm_model_forward.1} parent=1 // pred_fallthru
      _
    // Predicated region
    $region50: #{lstm_model_forward.1} parent=1 // pred_check
      _
    $region51: #{lstm_model_forward.1} parent=1 // pred_check_branch
      %1557 = sbr.rel (0) target = $region53
    $region52: #{lstm_model_forward.1} parent=1 // pred_region
      _
    $region53: #{lstm_model_forward.1} parent=1 // pred_fallthru
      _
    // Predicated region
    $region54: #{lstm_model_forward.1} parent=1 // pred_check
      _
    $region55: #{lstm_model_forward.1} parent=1 // pred_check_branch
      %1559 = sbr.rel (0) target = $region57
    $region56: #{lstm_model_forward.1} parent=1 // pred_region
      _
    $region57: #{lstm_model_forward.1} parent=1 // pred_fallthru
      _
    %1560 = vsyncpa [#allocation4], 1
    %1561 = vsyncpa [#allocation6], 1

</llo_original>
